<compile_context>
chip_gen: v5e
topology: v5e:2x2
jax: 0.10.0
libtpu: 0.0.40
codegen_flags: <defaults>
</compile_context>

<pallas_src>
import numpy as np
import jax
import jax.numpy as jnp
from jax.experimental import pallas as pl
from jax.experimental.pallas import tpu as pltpu

GN_EPS = 1e-5
# Ample for the <1 MiB/step blocks used here; safe on v5e/v6e (128 MiB phys)
# and v7x (64 MiB phys).  Raise on v5e/v6e (and keep <=~48 MiB on v7x) only if
# the per-batch-item block grows with real SR feature-map sizes.
VMEM_LIMIT = 32 * 1024 * 1024


# ---------------------------------------------------------------------------
# zero-padding masks for the lane-rolled 3x3 conv (built at trace time)
# ---------------------------------------------------------------------------
def _conv3x3_masks(H, W):
    HW = H * W
    i = np.arange(HW) // W
    j = np.arange(HW) % W
    masks = np.zeros((9, HW), np.float32)
    for tap in range(9):
        dy, dx = tap // 3 - 1, tap % 3 - 1
        valid = (i + dy >= 0) & (i + dy < H) & (j + dx >= 0) & (j + dx < W)
        masks[tap] = valid.astype(np.float32)
    return jnp.asarray(masks)


# ---------------------------------------------------------------------------
# the single fused kernel (channels on sublanes, HW on lanes)
# ---------------------------------------------------------------------------
def _make_srbw1_kernel(H, W, C, C2):
    HW = H * W
    inv_hw = 1.0 / float(HW)

    def kernel(x_ref, w1_ref, b1_ref, w2_ref, b2_ref, w3_ref, b3_ref,
               sa_ref, msk_ref, sc_ref, o_ref):
        x = x_ref[0].astype(jnp.float32)                      # (C, HW)

        # ---- body 1x1 convs fused: relu(W1 @ x + b1); W2 @ . + b2 ---------
        h1 = jnp.maximum(
            jnp.dot(w1_ref[...], x, preferred_element_type=jnp.float32)
            + b1_ref[...], 0.0)                               # (5C/2, HW)
        h2 = (jnp.dot(w2_ref[...], h1, preferred_element_type=jnp.float32)
              + b2_ref[...])                                  # (C/2, HW)

        # ---- 3x3 conv (padding=1): 9 lane-rolled masked matmuls ------------
        masks = msk_ref[...]                                  # (9, HW)
        acc = jnp.zeros((C, HW), jnp.float32)
        for tap in range(9):
            dy, dx = tap // 3 - 1, tap % 3 - 1
            s = dy * W + dx                                   # flat spatial shift
            if s == 0:
                shifted = h2
            else:
                shifted = pltpu.roll(h2, shift=(-s) % HW, axis=1)
                shifted = shifted * masks[tap:tap + 1, :]     # zero padding
            acc = acc + jnp.dot(w3_ref[tap], shifted,
                                preferred_element_type=jnp.float32)
        y = acc + b3_ref[...]                                 # (C, HW) shuffled order

        # ---- sa_layer gating (channel shuffle already folded) --------------
        m = jnp.sum(y, axis=1, keepdims=True) * inv_hw        # (C,1) avg pool
        d = y - m
        var = jnp.sum(d * d, axis=1, keepdims=True) * inv_hw  # biased var (GN)

        sa = sa_ref[...]                                      # (C, 8)
        cw, cb = sa[:, 0:1], sa[:, 1:2]                       # channel-branch affine
        gw, gb = sa[:, 2:3], sa[:, 3:4]                       # GroupNorm affine
        sw, sb = sa[:, 4:5], sa[:, 5:6]                       # spatial-branch affine
        is_sp = sa[:, 6:7]                                    # 1.0 -> spatial branch

        t_chan = cw * m + cb                                  # (C,1)
        xh = d * jax.lax.rsqrt(var + GN_EPS) * gw + gb        # (C,HW)
        t_spat = sw * xh + sb
        t = jnp.where(jnp.broadcast_to(is_sp, (C, HW)) > 0.5,
                      t_spat, jnp.broadcast_to(t_chan, (C, HW)))
        gate = pl.reciprocal(1.0 + jnp.exp(-t), approx=False)  # exact sigmoid (EUP)
        gated = y * gate

        # ---- residual combine: res_scale * sa(body(x)) + x_scale * x -------
        rs = sc_ref[0]
        xs = sc_ref[1]
        o_ref[0] = (gated * rs + x * xs).astype(o_ref.dtype)

    return kernel


def srbw1_fused(x_flat, p, H, W):
    N, C, HW = x_flat.shape
    C52 = p["w1t"].shape[0]
    C2 = p["w2t"].shape[0]
    masks = _conv3x3_masks(H, W)
    kern = _make_srbw1_kernel(H, W, C, C2)
    return pl.pallas_call(
        kern,
        grid=(N,),
        in_specs=[
            pl.BlockSpec((1, C, HW), lambda n: (n, 0, 0)),
            pl.BlockSpec((C52, C), lambda n: (0, 0)),
            pl.BlockSpec((C52, 1), lambda n: (0, 0)),
            pl.BlockSpec((C2, C52), lambda n: (0, 0)),
            pl.BlockSpec((C2, 1), lambda n: (0, 0)),
            pl.BlockSpec((9, C, C2), lambda n: (0, 0, 0)),
            pl.BlockSpec((C, 1), lambda n: (0, 0)),
            pl.BlockSpec((C, 8), lambda n: (0, 0)),
            pl.BlockSpec((9, HW), lambda n: (0, 0)),
            pl.BlockSpec(memory_space=pltpu.MemorySpace.SMEM),
        ],
        out_specs=pl.BlockSpec((1, C, HW), lambda n: (n, 0, 0)),
        out_shape=jax.ShapeDtypeStruct((N, C, HW), x_flat.dtype),
        compiler_params=pltpu.CompilerParams(
            dimension_semantics=("parallel",),   # batch items independent
            vmem_limit_bytes=VMEM_LIMIT,
        ),
    )(x_flat, p["w1t"], p["b1"], p["w2t"], p["b2"], p["w3t"], p["b3"],
      p["sa_pack"], masks, p["scales"])


@jax.jit
def srbw1_forward(params, x_nchw):
    N, C, H, W = x_nchw.shape
    x_flat = x_nchw.reshape(N, C, H * W)      # trailing-dims merge only
    y = srbw1_fused(x_flat, params, H, W)
    return y.reshape(N, C, H, W)


# ---------------------------------------------------------------------------
# parameters: torch-style init + shuffle/transpose folding
# ---------------------------------------------------------------------------
def init_srbw1_params(key, n_feats):
    C = n_feats
    assert C % 12 == 0, "n_feats must be divisible by 12 (sa_layer groups=6, chunk 2)"
    C52, C2, Ch = C * 5 // 2, C // 2, C // 12

    def conv_init(k, fan_in, shape_w, shape_b):
        bound = 1.0 / (fan_in ** 0.5)
        kw, kb = jax.random.split(k)
        w = jax.random.uniform(kw, shape_w, jnp.float32, -bound, bound)
        b = jax.random.uniform(kb, shape_b, jnp.float32, -bound, bound)
        return w, b

    k1, k2, k3 = jax.random.split(key, 3)
    w1, b1 = conv_init(k1, C, (C, C52), (C52,))
    w2, b2 = conv_init(k2, C52, (C52, C2), (C2,))
    w3, b3 = conv_init(k3, C2 * 9, (3, 3, C2, C), (C,))
    sa = dict(cweight=jnp.zeros((Ch,), jnp.float32),
              cbias=jnp.ones((Ch,), jnp.float32),
              sweight=jnp.zeros((Ch,), jnp.float32),
              sbias=jnp.ones((Ch,), jnp.float32),
              gn_w=jnp.ones((Ch,), jnp.float32),
              gn_b=jnp.zeros((Ch,), jnp.float32))
    return dict(w1=w1, b1=b1, w2=w2, b2=b2, w3=w3, b3=b3, sa=sa,
                res_scale=jnp.array(1.0, jnp.float32),
                x_scale=jnp.array(1.0, jnp.float32))


def prepare_srbw1_params(raw, n_feats):
    """Transpose weights for the channels-on-sublanes layout and fold
    channel_shuffle(out, 2) into the 3x3-conv output channels / sa params."""
    C = n_feats
    half, Cg, Ch = C // 2, C // 6, C // 12
    C2 = C // 2
    j = jnp.arange(C)
    perm = (j % 2) * half + (j // 2)          # out slot j <- original channel perm[j]

    w1t = raw["w1"].T                          # (5C/2, C)
    b1 = raw["b1"].reshape(-1, 1)
    w2t = raw["w2"].T                          # (C/2, 5C/2)
    b2 = raw["b2"].reshape(-1, 1)
    w3t = jnp.transpose(raw["w3"][..., perm], (0, 1, 3, 2)).reshape(9, C, C2)
    b3 = raw["b3"][perm].reshape(-1, 1)

    l = perm % Cg                              # local index inside sa group
    is_spatial = l >= Ch                       # second chunk -> GroupNorm branch
    idx_c = jnp.where(is_spatial, 0, l)
    idx_s = jnp.where(is_spatial, l - Ch, 0)
    sa = raw["sa"]
    sa_pack = jnp.stack([
        sa["cweight"][idx_c], sa["cbias"][idx_c],
        sa["gn_w"][idx_s], sa["gn_b"][idx_s],
        sa["sweight"][idx_s], sa["sbias"][idx_s],
        is_spatial.astype(jnp.float32),
        jnp.zeros((C,), jnp.float32),
    ], axis=1)                                 # (C, 8)

    scales = jnp.stack([raw["res_scale"], raw["x_scale"]]).astype(jnp.float32)

    # TODO(synk): for trained/loaded weights, fold weight_norm's g/||v|| factor
    # into w1t/w2t/w3t here (exact no-op at torch init since g = ||v||).
    return dict(w1t=w1t, b1=b1, w2t=w2t, b2=b2, w3t=w3t, b3=b3,
                sa_pack=sa_pack, scales=scales)


# ---------------------------------------------------------------------------
# pure-JAX fp32 reference (for in-script correctness validation)
# ---------------------------------------------------------------------------
def srbw1_reference(raw, x):
    # x: NHWC
    HI = jax.lax.Precision.HIGHEST
    N, H, W, C = x.shape
    h = jax.nn.relu(jnp.einsum('nhwc,cd->nhwd', x, raw["w1"], precision=HI) + raw["b1"])
    h = jnp.einsum('nhwc,cd->nhwd', h, raw["w2"], precision=HI) + raw["b2"]
    hp = jnp.pad(h, ((0, 0), (1, 1), (1, 1), (0, 0)))
    y = jax.lax.conv_general_dilated(
        hp, raw["w3"], (1, 1), 'VALID',
        dimension_numbers=('NHWC', 'HWIO', 'NHWC'), precision=HI) + raw["b3"]

    groups, Cg = 6, C // 6
    Ch = Cg // 2
    sa = raw["sa"]
    yg = y.reshape(N, H, W, groups, Cg)
    x0, x1 = yg[..., :Ch], yg[..., Ch:]
    m0 = jnp.mean(x0, axis=(1, 2), keepdims=True)
    xn = x0 * jax.nn.sigmoid(sa["cweight"] * m0 + sa["cbias"])
    mu = jnp.mean(x1, axis=(1, 2), keepdims=True)
    var = jnp.mean((x1 - mu) ** 2, axis=(1, 2), keepdims=True)
    xh = (x1 - mu) / jnp.sqrt(var + GN_EPS) * sa["gn_w"] + sa["gn_b"]
    xs = x1 * jax.nn.sigmoid(sa["sweight"] * xh + sa["sbias"])
    out = jnp.concatenate([xn, xs], axis=-1).reshape(N, H, W, C)
    # channel_shuffle(out, 2)
    out = out.reshape(N, H, W, 2, C // 2).transpose(0, 1, 2, 4, 3).reshape(N, H, W, C)
    return out * raw["res_scale"] + x * raw["x_scale"]


# ---------------------------------------------------------------------------
if __name__ == "__main__":
    n_feats = 24          # must be divisible by 12
    N, H, W = 2, 16, 16

    key = jax.random.PRNGKey(0)
    kp, kx = jax.random.split(key)
    raw = init_srbw1_params(kp, n_feats)               # torch-default init
    params = prepare_srbw1_params(raw, n_feats)

    x_nchw = jax.random.normal(kx, (N, n_feats, H, W), jnp.float32)
    y = jax.block_until_ready(srbw1_forward(params, x_nchw))
    assert y.shape == (N, n_feats, H, W), y.shape
    assert bool(jnp.all(jnp.isfinite(y)))

    # correctness vs pure-JAX fp32 reference
    x_nhwc = jnp.transpose(x_nchw, (0, 2, 3, 1))
    ref = jnp.transpose(srbw1_reference(raw, x_nhwc), (0, 3, 1, 2))
    err = float(jnp.max(jnp.abs(y - ref)))
    assert err < 2e-3, f"max abs error {err}"

    # second check with non-trivial sa parameters so both gate branches
    # (channel avg-pool gate and GroupNorm spatial gate) are truly exercised
    ks = jax.random.split(jax.random.PRNGKey(1), 6)
    Ch = n_feats // 12
    raw2 = dict(raw)
    raw2["sa"] = dict(
        cweight=0.5 * jax.random.normal(ks[0], (Ch,), jnp.float32),
        cbias=0.5 * jax.random.normal(ks[1], (Ch,), jnp.float32),
        sweight=0.5 * jax.random.normal(ks[2], (Ch,), jnp.float32),
        sbias=0.5 * jax.random.normal(ks[3], (Ch,), jnp.float32),
        gn_w=1.0 + 0.1 * jax.random.normal(ks[4], (Ch,), jnp.float32),
        gn_b=0.1 * jax.random.normal(ks[5], (Ch,), jnp.float32),
    )
    params2 = prepare_srbw1_params(raw2, n_feats)
    y2 = jax.block_until_ready(srbw1_forward(params2, x_nchw))
    ref2 = jnp.transpose(srbw1_reference(raw2, x_nhwc), (0, 3, 1, 2))
    err2 = float(jnp.max(jnp.abs(y2 - ref2)))
    assert err2 < 2e-3, f"max abs error (randomized sa) {err2}"

    print("KERNEL_OK")
</pallas_src>

<mosaic_0001>
module attributes {stable_mosaic.version = 11 : i64} {
  func.func @kernel(%arg0: i32, %arg1: memref<1x24x256xf32, #tpu.memory_space<vmem>>, %arg2: memref<60x24xf32, #tpu.memory_space<vmem>>, %arg3: memref<60x1xf32, #tpu.memory_space<vmem>>, %arg4: memref<12x60xf32, #tpu.memory_space<vmem>>, %arg5: memref<12x1xf32, #tpu.memory_space<vmem>>, %arg6: memref<9x24x12xf32, #tpu.memory_space<vmem>>, %arg7: memref<24x1xf32, #tpu.memory_space<vmem>>, %arg8: memref<24x8xf32, #tpu.memory_space<vmem>>, %arg9: memref<9x256xf32, #tpu.memory_space<vmem>>, %arg10: memref<2xf32, #tpu.memory_space<smem>>, %arg11: memref<1x24x256xf32, #tpu.memory_space<vmem>>) attributes {dimension_semantics = [#tpu.dimension_semantics<parallel>], iteration_bounds = array<i64: 2>, scalar_prefetch = 0 : i64, scratch_operands = 0 : i64, tpu.core_type = #tpu.core_type<tc>, window_params = [{transform_indices = @transform_0, window_bounds = array<i64: 1, 24, 256>}, {pipeline_mode = #tpu.pipeline_mode<synchronous>, transform_indices = @transform_1, window_bounds = array<i64: 60, 24>}, {pipeline_mode = #tpu.pipeline_mode<synchronous>, transform_indices = @transform_2, window_bounds = array<i64: 60, 1>}, {pipeline_mode = #tpu.pipeline_mode<synchronous>, transform_indices = @transform_3, window_bounds = array<i64: 12, 60>}, {pipeline_mode = #tpu.pipeline_mode<synchronous>, transform_indices = @transform_4, window_bounds = array<i64: 12, 1>}, {pipeline_mode = #tpu.pipeline_mode<synchronous>, transform_indices = @transform_5, window_bounds = array<i64: 9, 24, 12>}, {pipeline_mode = #tpu.pipeline_mode<synchronous>, transform_indices = @transform_6, window_bounds = array<i64: 24, 1>}, {pipeline_mode = #tpu.pipeline_mode<synchronous>, transform_indices = @transform_7, window_bounds = array<i64: 24, 8>}, {pipeline_mode = #tpu.pipeline_mode<synchronous>, transform_indices = @transform_8, window_bounds = array<i64: 9, 256>}, {transform_indices = @transform_9, window_bounds = array<i64: 2>}, {transform_indices = @transform_10, window_bounds = array<i64: 1, 24, 256>}]} {
    %c0 = arith.constant 0 : index
    %c0_0 = arith.constant 0 : index
    %c0_1 = arith.constant 0 : index
    %0 = vector.load %arg1[%c0, %c0_0, %c0_1] : memref<1x24x256xf32, #tpu.memory_space<vmem>>, vector<1x24x256xf32>
    %1 = vector.shape_cast %0 : vector<1x24x256xf32> to vector<24x256xf32>
    %c0_2 = arith.constant 0 : index
    %c0_3 = arith.constant 0 : index
    %2 = vector.load %arg2[%c0_2, %c0_3] : memref<60x24xf32, #tpu.memory_space<vmem>>, vector<60x24xf32>
    %cst = arith.constant dense<0.000000e+00> : vector<60x256xf32>
    %3 = tpu.matmul %2, %1, %cst {dimension_numbers = #tpu.dot_dimension_numbers<[1], [0], [0], [1], [0, 0, 1, 1], [], []>} : vector<60x24xf32>, vector<24x256xf32>, vector<60x256xf32> -> vector<60x256xf32>
    %c0_4 = arith.constant 0 : index
    %c0_5 = arith.constant 0 : index
    %4 = vector.load %arg3[%c0_4, %c0_5] : memref<60x1xf32, #tpu.memory_space<vmem>>, vector<60x1xf32>
    %5 = vector.broadcast %4 : vector<60x1xf32> to vector<60x256xf32>
    %6 = arith.addf %3, %5 : vector<60x256xf32>
    %cst_6 = arith.constant 0.000000e+00 : f32
    %7 = vector.broadcast %cst_6 : f32 to vector<60x256xf32>
    %8 = arith.maximumf %6, %7 : vector<60x256xf32>
    %c0_7 = arith.constant 0 : index
    %c0_8 = arith.constant 0 : index
    %9 = vector.load %arg4[%c0_7, %c0_8] : memref<12x60xf32, #tpu.memory_space<vmem>>, vector<12x60xf32>
    %cst_9 = arith.constant dense<0.000000e+00> : vector<12x256xf32>
    %10 = tpu.matmul %9, %8, %cst_9 {dimension_numbers = #tpu.dot_dimension_numbers<[1], [0], [0], [1], [0, 0, 1, 1], [], []>} : vector<12x60xf32>, vector<60x256xf32>, vector<12x256xf32> -> vector<12x256xf32>
    %c0_10 = arith.constant 0 : index
    %c0_11 = arith.constant 0 : index
    %11 = vector.load %arg5[%c0_10, %c0_11] : memref<12x1xf32, #tpu.memory_space<vmem>>, vector<12x1xf32>
    %12 = vector.broadcast %11 : vector<12x1xf32> to vector<12x256xf32>
    %13 = arith.addf %10, %12 : vector<12x256xf32>
    %c0_12 = arith.constant 0 : index
    %c0_13 = arith.constant 0 : index
    %14 = vector.load %arg9[%c0_12, %c0_13] : memref<9x256xf32, #tpu.memory_space<vmem>>, vector<9x256xf32>
    %cst_14 = arith.constant 0.000000e+00 : f32
    %15 = vector.broadcast %cst_14 : f32 to vector<24x256xf32>
    %c17_i32 = arith.constant 17 : i32
    %16 = tpu.dynamic_rotate %13 by %c17_i32 dim 1 : vector<12x256xf32>, i32 -> vector<12x256xf32>
    %17 = vector.extract_strided_slice %14 {offsets = [0, 0], sizes = [1, 256], strides = [1, 1]} : vector<9x256xf32> to vector<1x256xf32>
    %18 = vector.broadcast %17 : vector<1x256xf32> to vector<12x256xf32>
    %19 = arith.mulf %16, %18 : vector<12x256xf32>
    %c0_15 = arith.constant 0 : index
    %c0_16 = arith.constant 0 : index
    %c0_17 = arith.constant 0 : index
    %20 = vector.load %arg6[%c0_15, %c0_16, %c0_17] : memref<9x24x12xf32, #tpu.memory_space<vmem>>, vector<1x24x12xf32>
    %21 = vector.shape_cast %20 : vector<1x24x12xf32> to vector<24x12xf32>
    %cst_18 = arith.constant dense<0.000000e+00> : vector<24x256xf32>
    %22 = tpu.matmul %21, %19, %cst_18 {dimension_numbers = #tpu.dot_dimension_numbers<[1], [0], [0], [1], [0, 0, 1, 1], [], []>} : vector<24x12xf32>, vector<12x256xf32>, vector<24x256xf32> -> vector<24x256xf32>
    %23 = arith.addf %15, %22 : vector<24x256xf32>
    %c16_i32 = arith.constant 16 : i32
    %24 = tpu.dynamic_rotate %13 by %c16_i32 dim 1 : vector<12x256xf32>, i32 -> vector<12x256xf32>
    %25 = vector.extract_strided_slice %14 {offsets = [1, 0], sizes = [1, 256], strides = [1, 1]} : vector<9x256xf32> to vector<1x256xf32>
    %26 = vector.broadcast %25 : vector<1x256xf32> to vector<12x256xf32>
    %27 = arith.mulf %24, %26 : vector<12x256xf32>
    %c1 = arith.constant 1 : index
    %c0_19 = arith.constant 0 : index
    %c0_20 = arith.constant 0 : index
    %28 = vector.load %arg6[%c1, %c0_19, %c0_20] : memref<9x24x12xf32, #tpu.memory_space<vmem>>, vector<1x24x12xf32>
    %29 = vector.shape_cast %28 : vector<1x24x12xf32> to vector<24x12xf32>
    %cst_21 = arith.constant dense<0.000000e+00> : vector<24x256xf32>
    %30 = tpu.matmul %29, %27, %cst_21 {dimension_numbers = #tpu.dot_dimension_numbers<[1], [0], [0], [1], [0, 0, 1, 1], [], []>} : vector<24x12xf32>, vector<12x256xf32>, vector<24x256xf32> -> vector<24x256xf32>
    %31 = arith.addf %23, %30 : vector<24x256xf32>
    %c15_i32 = arith.constant 15 : i32
    %32 = tpu.dynamic_rotate %13 by %c15_i32 dim 1 : vector<12x256xf32>, i32 -> vector<12x256xf32>
    %33 = vector.extract_strided_slice %14 {offsets = [2, 0], sizes = [1, 256], strides = [1, 1]} : vector<9x256xf32> to vector<1x256xf32>
    %34 = vector.broadcast %33 : vector<1x256xf32> to vector<12x256xf32>
    %35 = arith.mulf %32, %34 : vector<12x256xf32>
    %c2 = arith.constant 2 : index
    %c0_22 = arith.constant 0 : index
    %c0_23 = arith.constant 0 : index
    %36 = vector.load %arg6[%c2, %c0_22, %c0_23] : memref<9x24x12xf32, #tpu.memory_space<vmem>>, vector<1x24x12xf32>
    %37 = vector.shape_cast %36 : vector<1x24x12xf32> to vector<24x12xf32>
    %cst_24 = arith.constant dense<0.000000e+00> : vector<24x256xf32>
    %38 = tpu.matmul %37, %35, %cst_24 {dimension_numbers = #tpu.dot_dimension_numbers<[1], [0], [0], [1], [0, 0, 1, 1], [], []>} : vector<24x12xf32>, vector<12x256xf32>, vector<24x256xf32> -> vector<24x256xf32>
    %39 = arith.addf %31, %38 : vector<24x256xf32>
    %c1_i32 = arith.constant 1 : i32
    %40 = tpu.dynamic_rotate %13 by %c1_i32 dim 1 : vector<12x256xf32>, i32 -> vector<12x256xf32>
    %41 = vector.extract_strided_slice %14 {offsets = [3, 0], sizes = [1, 256], strides = [1, 1]} : vector<9x256xf32> to vector<1x256xf32>
    %42 = vector.broadcast %41 : vector<1x256xf32> to vector<12x256xf32>
    %43 = arith.mulf %40, %42 : vector<12x256xf32>
    %c3 = arith.constant 3 : index
    %c0_25 = arith.constant 0 : index
    %c0_26 = arith.constant 0 : index
    %44 = vector.load %arg6[%c3, %c0_25, %c0_26] : memref<9x24x12xf32, #tpu.memory_space<vmem>>, vector<1x24x12xf32>
    %45 = vector.shape_cast %44 : vector<1x24x12xf32> to vector<24x12xf32>
    %cst_27 = arith.constant dense<0.000000e+00> : vector<24x256xf32>
    %46 = tpu.matmul %45, %43, %cst_27 {dimension_numbers = #tpu.dot_dimension_numbers<[1], [0], [0], [1], [0, 0, 1, 1], [], []>} : vector<24x12xf32>, vector<12x256xf32>, vector<24x256xf32> -> vector<24x256xf32>
    %47 = arith.addf %39, %46 : vector<24x256xf32>
    %c4 = arith.constant 4 : index
    %c0_28 = arith.constant 0 : index
    %c0_29 = arith.constant 0 : index
    %48 = vector.load %arg6[%c4, %c0_28, %c0_29] : memref<9x24x12xf32, #tpu.memory_space<vmem>>, vector<1x24x12xf32>
    %49 = vector.shape_cast %48 : vector<1x24x12xf32> to vector<24x12xf32>
    %cst_30 = arith.constant dense<0.000000e+00> : vector<24x256xf32>
    %50 = tpu.matmul %49, %13, %cst_30 {dimension_numbers = #tpu.dot_dimension_numbers<[1], [0], [0], [1], [0, 0, 1, 1], [], []>} : vector<24x12xf32>, vector<12x256xf32>, vector<24x256xf32> -> vector<24x256xf32>
    %51 = arith.addf %47, %50 : vector<24x256xf32>
    %c255_i32 = arith.constant 255 : i32
    %52 = tpu.dynamic_rotate %13 by %c255_i32 dim 1 : vector<12x256xf32>, i32 -> vector<12x256xf32>
    %53 = vector.extract_strided_slice %14 {offsets = [5, 0], sizes = [1, 256], strides = [1, 1]} : vector<9x256xf32> to vector<1x256xf32>
    %54 = vector.broadcast %53 : vector<1x256xf32> to vector<12x256xf32>
    %55 = arith.mulf %52, %54 : vector<12x256xf32>
    %c5 = arith.constant 5 : index
    %c0_31 = arith.constant 0 : index
    %c0_32 = arith.constant 0 : index
    %56 = vector.load %arg6[%c5, %c0_31, %c0_32] : memref<9x24x12xf32, #tpu.memory_space<vmem>>, vector<1x24x12xf32>
    %57 = vector.shape_cast %56 : vector<1x24x12xf32> to vector<24x12xf32>
    %cst_33 = arith.constant dense<0.000000e+00> : vector<24x256xf32>
    %58 = tpu.matmul %57, %55, %cst_33 {dimension_numbers = #tpu.dot_dimension_numbers<[1], [0], [0], [1], [0, 0, 1, 1], [], []>} : vector<24x12xf32>, vector<12x256xf32>, vector<24x256xf32> -> vector<24x256xf32>
    %59 = arith.addf %51, %58 : vector<24x256xf32>
    %c241_i32 = arith.constant 241 : i32
    %60 = tpu.dynamic_rotate %13 by %c241_i32 dim 1 : vector<12x256xf32>, i32 -> vector<12x256xf32>
    %61 = vector.extract_strided_slice %14 {offsets = [6, 0], sizes = [1, 256], strides = [1, 1]} : vector<9x256xf32> to vector<1x256xf32>
    %62 = vector.broadcast %61 : vector<1x256xf32> to vector<12x256xf32>
    %63 = arith.mulf %60, %62 : vector<12x256xf32>
    %c6 = arith.constant 6 : index
    %c0_34 = arith.constant 0 : index
    %c0_35 = arith.constant 0 : index
    %64 = vector.load %arg6[%c6, %c0_34, %c0_35] : memref<9x24x12xf32, #tpu.memory_space<vmem>>, vector<1x24x12xf32>
    %65 = vector.shape_cast %64 : vector<1x24x12xf32> to vector<24x12xf32>
    %cst_36 = arith.constant dense<0.000000e+00> : vector<24x256xf32>
    %66 = tpu.matmul %65, %63, %cst_36 {dimension_numbers = #tpu.dot_dimension_numbers<[1], [0], [0], [1], [0, 0, 1, 1], [], []>} : vector<24x12xf32>, vector<12x256xf32>, vector<24x256xf32> -> vector<24x256xf32>
    %67 = arith.addf %59, %66 : vector<24x256xf32>
    %c240_i32 = arith.constant 240 : i32
    %68 = tpu.dynamic_rotate %13 by %c240_i32 dim 1 : vector<12x256xf32>, i32 -> vector<12x256xf32>
    %69 = vector.extract_strided_slice %14 {offsets = [7, 0], sizes = [1, 256], strides = [1, 1]} : vector<9x256xf32> to vector<1x256xf32>
    %70 = vector.broadcast %69 : vector<1x256xf32> to vector<12x256xf32>
    %71 = arith.mulf %68, %70 : vector<12x256xf32>
    %c7 = arith.constant 7 : index
    %c0_37 = arith.constant 0 : index
    %c0_38 = arith.constant 0 : index
    %72 = vector.load %arg6[%c7, %c0_37, %c0_38] : memref<9x24x12xf32, #tpu.memory_space<vmem>>, vector<1x24x12xf32>
    %73 = vector.shape_cast %72 : vector<1x24x12xf32> to vector<24x12xf32>
    %cst_39 = arith.constant dense<0.000000e+00> : vector<24x256xf32>
    %74 = tpu.matmul %73, %71, %cst_39 {dimension_numbers = #tpu.dot_dimension_numbers<[1], [0], [0], [1], [0, 0, 1, 1], [], []>} : vector<24x12xf32>, vector<12x256xf32>, vector<24x256xf32> -> vector<24x256xf32>
    %75 = arith.addf %67, %74 : vector<24x256xf32>
    %c239_i32 = arith.constant 239 : i32
    %76 = tpu.dynamic_rotate %13 by %c239_i32 dim 1 : vector<12x256xf32>, i32 -> vector<12x256xf32>
    %77 = vector.extract_strided_slice %14 {offsets = [8, 0], sizes = [1, 256], strides = [1, 1]} : vector<9x256xf32> to vector<1x256xf32>
    %78 = vector.broadcast %77 : vector<1x256xf32> to vector<12x256xf32>
    %79 = arith.mulf %76, %78 : vector<12x256xf32>
    %c8 = arith.constant 8 : index
    %c0_40 = arith.constant 0 : index
    %c0_41 = arith.constant 0 : index
    %80 = vector.load %arg6[%c8, %c0_40, %c0_41] : memref<9x24x12xf32, #tpu.memory_space<vmem>>, vector<1x24x12xf32>
    %81 = vector.shape_cast %80 : vector<1x24x12xf32> to vector<24x12xf32>
    %cst_42 = arith.constant dense<0.000000e+00> : vector<24x256xf32>
    %82 = tpu.matmul %81, %79, %cst_42 {dimension_numbers = #tpu.dot_dimension_numbers<[1], [0], [0], [1], [0, 0, 1, 1], [], []>} : vector<24x12xf32>, vector<12x256xf32>, vector<24x256xf32> -> vector<24x256xf32>
    %83 = arith.addf %75, %82 : vector<24x256xf32>
    %c0_43 = arith.constant 0 : index
    %c0_44 = arith.constant 0 : index
    %84 = vector.load %arg7[%c0_43, %c0_44] : memref<24x1xf32, #tpu.memory_space<vmem>>, vector<24x1xf32>
    %85 = vector.broadcast %84 : vector<24x1xf32> to vector<24x256xf32>
    %86 = arith.addf %83, %85 : vector<24x256xf32>
    %cst_45 = arith.constant dense<0.000000e+00> : vector<24xf32>
    %87 = vector.multi_reduction <add>, %86, %cst_45 [1] : vector<24x256xf32> to vector<24xf32>
    %88 = vector.shape_cast %87 : vector<24xf32> to vector<24x1xf32>
    %cst_46 = arith.constant 3.906250e-03 : f32
    %89 = vector.broadcast %cst_46 : f32 to vector<24x1xf32>
    %90 = arith.mulf %88, %89 : vector<24x1xf32>
    %91 = vector.broadcast %90 : vector<24x1xf32> to vector<24x256xf32>
    %92 = arith.subf %86, %91 : vector<24x256xf32>
    %93 = arith.mulf %92, %92 : vector<24x256xf32>
    %cst_47 = arith.constant dense<0.000000e+00> : vector<24xf32>
    %94 = vector.multi_reduction <add>, %93, %cst_47 [1] : vector<24x256xf32> to vector<24xf32>
    %95 = vector.shape_cast %94 : vector<24xf32> to vector<24x1xf32>
    %cst_48 = arith.constant 3.906250e-03 : f32
    %96 = vector.broadcast %cst_48 : f32 to vector<24x1xf32>
    %97 = arith.mulf %95, %96 : vector<24x1xf32>
    %c0_49 = arith.constant 0 : index
    %c0_50 = arith.constant 0 : index
    %98 = vector.load %arg8[%c0_49, %c0_50] : memref<24x8xf32, #tpu.memory_space<vmem>>, vector<24x8xf32>
    %99 = vector.extract_strided_slice %98 {offsets = [0, 0], sizes = [24, 1], strides = [1, 1]} : vector<24x8xf32> to vector<24x1xf32>
    %100 = vector.extract_strided_slice %98 {offsets = [0, 1], sizes = [24, 1], strides = [1, 1]} : vector<24x8xf32> to vector<24x1xf32>
    %101 = vector.extract_strided_slice %98 {offsets = [0, 2], sizes = [24, 1], strides = [1, 1]} : vector<24x8xf32> to vector<24x1xf32>
    %102 = vector.extract_strided_slice %98 {offsets = [0, 3], sizes = [24, 1], strides = [1, 1]} : vector<24x8xf32> to vector<24x1xf32>
    %103 = vector.extract_strided_slice %98 {offsets = [0, 4], sizes = [24, 1], strides = [1, 1]} : vector<24x8xf32> to vector<24x1xf32>
    %104 = vector.extract_strided_slice %98 {offsets = [0, 5], sizes = [24, 1], strides = [1, 1]} : vector<24x8xf32> to vector<24x1xf32>
    %105 = vector.extract_strided_slice %98 {offsets = [0, 6], sizes = [24, 1], strides = [1, 1]} : vector<24x8xf32> to vector<24x1xf32>
    %106 = arith.mulf %99, %90 : vector<24x1xf32>
    %107 = arith.addf %106, %100 : vector<24x1xf32>
    %cst_51 = arith.constant 9.99999974E-6 : f32
    %108 = vector.broadcast %cst_51 : f32 to vector<24x1xf32>
    %109 = arith.addf %97, %108 : vector<24x1xf32>
    %110 = math.rsqrt %109 : vector<24x1xf32>
    %111 = vector.broadcast %110 : vector<24x1xf32> to vector<24x256xf32>
    %112 = arith.mulf %92, %111 : vector<24x256xf32>
    %113 = vector.broadcast %101 : vector<24x1xf32> to vector<24x256xf32>
    %114 = arith.mulf %112, %113 : vector<24x256xf32>
    %115 = vector.broadcast %102 : vector<24x1xf32> to vector<24x256xf32>
    %116 = arith.addf %114, %115 : vector<24x256xf32>
    %117 = vector.broadcast %103 : vector<24x1xf32> to vector<24x256xf32>
    %118 = arith.mulf %117, %116 : vector<24x256xf32>
    %119 = vector.broadcast %104 : vector<24x1xf32> to vector<24x256xf32>
    %120 = arith.addf %118, %119 : vector<24x256xf32>
    %121 = vector.shape_cast %105 : vector<24x1xf32> to vector<24x1xf32>
    %122 = vector.broadcast %121 : vector<24x1xf32> to vector<24x256xf32>
    %cst_52 = arith.constant 5.000000e-01 : f32
    %123 = vector.broadcast %cst_52 : f32 to vector<24x256xf32>
    %124 = arith.cmpf ogt, %122, %123 : vector<24x256xf32>
    %125 = vector.shape_cast %107 : vector<24x1xf32> to vector<24x1xf32>
    %126 = vector.broadcast %125 : vector<24x1xf32> to vector<24x256xf32>
    %127 = arith.select %124, %120, %126 : vector<24x256xi1>, vector<24x256xf32>
    %cst_53 = arith.constant 0.000000e+00 : f32
    %128 = vector.broadcast %cst_53 : f32 to vector<24x256xf32>
    %129 = arith.subf %128, %127 : vector<24x256xf32>
    %130 = math.exp %129 : vector<24x256xf32>
    %cst_54 = arith.constant 1.000000e+00 : f32
    %131 = vector.broadcast %cst_54 : f32 to vector<24x256xf32>
    %132 = arith.addf %131, %130 : vector<24x256xf32>
    %133 = tpu.reciprocal %132 : vector<24x256xf32> -> vector<24x256xf32>
    %134 = arith.mulf %86, %133 : vector<24x256xf32>
    %c0_55 = arith.constant 0 : index
    %135 = memref.load %arg10[%c0_55] : memref<2xf32, #tpu.memory_space<smem>>
    %c1_56 = arith.constant 1 : index
    %136 = memref.load %arg10[%c1_56] : memref<2xf32, #tpu.memory_space<smem>>
    %137 = vector.broadcast %135 : f32 to vector<24x256xf32>
    %138 = arith.mulf %134, %137 : vector<24x256xf32>
    %139 = vector.broadcast %136 : f32 to vector<24x256xf32>
    %140 = arith.mulf %1, %139 : vector<24x256xf32>
    %141 = arith.addf %138, %140 : vector<24x256xf32>
    %c0_57 = arith.constant 0 : index
    %c0_58 = arith.constant 0 : index
    %c0_59 = arith.constant 0 : index
    %142 = vector.load %arg11[%c0_57, %c0_58, %c0_59] : memref<1x24x256xf32, #tpu.memory_space<vmem>>, vector<1x24x256xf32>
    %143 = vector.shape_cast %142 : vector<1x24x256xf32> to vector<24x256xf32>
    %144 = vector.shape_cast %141 : vector<24x256xf32> to vector<1x24x256xf32>
    tpu.vector_store %arg11[%c0_57, %c0_58, %c0_59], %144 {strides = array<i32>} : memref<1x24x256xf32, #tpu.memory_space<vmem>>, vector<1x24x256xf32>,
    return
  }
  func.func @transform_0(%arg0: i32) -> (i32, i32, i32) {
    %c0_i32 = arith.constant 0 : i32
    %c0_i32_0 = arith.constant 0 : i32
    %c0_i32_1 = arith.constant 0 : i32
    return %arg0, %c0_i32, %c0_i32_0 : i32, i32, i32
  }
  func.func @transform_1(%arg0: i32) -> (i32, i32) {
    %c0_i32 = arith.constant 0 : i32
    %c0_i32_0 = arith.constant 0 : i32
    %c0_i32_1 = arith.constant 0 : i32
    return %c0_i32, %c0_i32_0 : i32, i32
  }
  func.func @transform_2(%arg0: i32) -> (i32, i32) {
    %c0_i32 = arith.constant 0 : i32
    %c0_i32_0 = arith.constant 0 : i32
    %c0_i32_1 = arith.constant 0 : i32
    return %c0_i32, %c0_i32_0 : i32, i32
  }
  func.func @transform_3(%arg0: i32) -> (i32, i32) {
    %c0_i32 = arith.constant 0 : i32
    %c0_i32_0 = arith.constant 0 : i32
    %c0_i32_1 = arith.constant 0 : i32
    return %c0_i32, %c0_i32_0 : i32, i32
  }
  func.func @transform_4(%arg0: i32) -> (i32, i32) {
    %c0_i32 = arith.constant 0 : i32
    %c0_i32_0 = arith.constant 0 : i32
    %c0_i32_1 = arith.constant 0 : i32
    return %c0_i32, %c0_i32_0 : i32, i32
  }
  func.func @transform_5(%arg0: i32) -> (i32, i32, i32) {
    %c0_i32 = arith.constant 0 : i32
    %c0_i32_0 = arith.constant 0 : i32
    %c0_i32_1 = arith.constant 0 : i32
    %c0_i32_2 = arith.constant 0 : i32
    return %c0_i32, %c0_i32_0, %c0_i32_1 : i32, i32, i32
  }
  func.func @transform_6(%arg0: i32) -> (i32, i32) {
    %c0_i32 = arith.constant 0 : i32
    %c0_i32_0 = arith.constant 0 : i32
    %c0_i32_1 = arith.constant 0 : i32
    return %c0_i32, %c0_i32_0 : i32, i32
  }
  func.func @transform_7(%arg0: i32) -> (i32, i32) {
    %c0_i32 = arith.constant 0 : i32
    %c0_i32_0 = arith.constant 0 : i32
    %c0_i32_1 = arith.constant 0 : i32
    return %c0_i32, %c0_i32_0 : i32, i32
  }
  func.func @transform_8(%arg0: i32) -> (i32, i32) {
    %c0_i32 = arith.constant 0 : i32
    %c0_i32_0 = arith.constant 0 : i32
    %c0_i32_1 = arith.constant 0 : i32
    return %c0_i32, %c0_i32_0 : i32, i32
  }
  func.func @transform_9(%arg0: i32) -> i32 {
    %c0_i32 = arith.constant 0 : i32
    %c0_i32_0 = arith.constant 0 : i32
    return %c0_i32 : i32
  }
  func.func @transform_10(%arg0: i32) -> (i32, i32, i32) {
    %c0_i32 = arith.constant 0 : i32
    %c0_i32_0 = arith.constant 0 : i32
    %c0_i32_1 = arith.constant 0 : i32
    return %arg0, %c0_i32, %c0_i32_0 : i32, i32, i32
  }
}

</mosaic_0001>

<llo_original>
// kernel: srbw1_forward.1
$region0: #{srbw1_forward.1}
  #allocation0 [shape = 'u32[]', space=smem, size = 0x4, offset = 0x4, fixed_abs, tag = 'smem constant byte address 0x4 - core index']
  #allocation1 [shape = 'u32[72,128]{1,0:T(1,128)}', space=vmem, size = 0x9000, scoped, tag = 'internal scratch']
  %s0 = inlined_call_operand.vmem [shape: f32[2,24,256], index: 0, kind: input, shape index: {}]
  %s1 = inlined_call_operand.vmem [shape: f32[60,24], index: 1, kind: input, shape index: {}]
  %s2 = inlined_call_operand.vmem [shape: f32[60,1], index: 2, kind: input, shape index: {}]
  %s3 = inlined_call_operand.vmem [shape: f32[12,60], index: 3, kind: input, shape index: {}]
  %s4 = inlined_call_operand.vmem [shape: f32[12,1], index: 4, kind: input, shape index: {}]
  %s5 = inlined_call_operand.vmem [shape: f32[9,24,12], index: 5, kind: input, shape index: {}]
  %s6 = inlined_call_operand.vmem [shape: f32[24,1], index: 6, kind: input, shape index: {}]
  %s7 = inlined_call_operand.vmem [shape: f32[24,8], index: 7, kind: input, shape index: {}]
  %s8 = inlined_call_operand.vmem [shape: f32[9,256], index: 8, kind: input, shape index: {}]
  %s9 = inlined_call_operand.vmem [shape: f32[2], index: 9, kind: input, shape index: {}]
  %s10 = inlined_call_operand.vmem [shape: f32[2,24,256], index: 10, kind: output, shape index: {}]
  %s11 = sld [smem:[#allocation0]]
  $region77: #{srbw1_forward.1} parent=0
    _
  %s13 = ssub.s32 1, %s11
  %s14 = scalar_select 0, %s13, %s11
  $region1: #{srbw1_forward.1} parent=0
    #allocation2 [shape = 'u8[512]{0}', space=smem, size = 0x200, scoped, tag = 'input window, operand 9, single buffered']
    #allocation3 [shape = 's32[2]{0}', space=sflag, size = 0x8, scoped, tag = 'scoped memory for srbw1_forward.1']
    %15 = vsyncpa [#allocation3], 0
    loop: start=0, step=1, limit=4
    $region2: #{srbw1_forward.1} parent=1 // loop_pre_header
      _
    $region3: #{srbw1_forward.1} parent=1 // loop_header
      %s17 = sphi 0, %s21
      %p18 = scmp.ge.s32.totalorder %s17, 4
      %s27 = sphi 0, %s29
      %s30 = sphi 0, %s27
      %s31 = sphi 0, %s30
      %s47 = sphi 0, %s31
      %s51 = sphi 0, %s51
      %s53 = sphi 0, %s51
      %s54 = sphi 0, %s53
      %s68 = sphi 0, %s54
      %s72 = sphi 0, %s72
      %s74 = sphi 0, %s72
      %s75 = sphi 0, %s74
      %s89 = sphi 0, %s75
      %s93 = sphi 0, %s93
      %s95 = sphi 0, %s93
      %s96 = sphi 0, %s95
      %s110 = sphi 0, %s96
      %s114 = sphi 0, %s114
      %s116 = sphi 0, %s114
      %s117 = sphi 0, %s116
      %s131 = sphi 0, %s117
      %s135 = sphi 0, %s135
      %s137 = sphi 0, %s135
      %s138 = sphi 0, %s137
      %s152 = sphi 0, %s138
      %s156 = sphi 0, %s156
      %s158 = sphi 0, %s156
      %s159 = sphi 0, %s158
      %s173 = sphi 0, %s159
      %s177 = sphi 0, %s177
      %s179 = sphi 0, %s177
      %s180 = sphi 0, %s179
      %s194 = sphi 0, %s180
      %s198 = sphi 0, %s198
      %s200 = sphi 0, %s198
      %s201 = sphi 0, %s200
      %s215 = sphi 0, %s201
      %s219 = sphi 0, %s219
      %s221 = sphi 0, %s219
      %s222 = sphi 0, %s221
      %s236 = sphi 0, %s222
      %s242 = sphi 0, %s244
      %s245 = sphi 0, %s242
      %s246 = sphi 0, %s245
      %s262 = sphi 0, %s246
    $region4: #{srbw1_forward.1} parent=1 // loop_header_branch
      %20 = sbr.rel (%p18) target = $region8
    $region5: #{srbw1_forward.1} parent=1 // loop_body
      %s22 = ssub.s32 %s17, 1
      %s23 = ssub.s32 %s17, 2
      %s24 = sadd.s32 %s17, 1
      %s25 = ssub.s32 %s17, %s24
      %p26 = scmp.eq.s32.totalorder %s25, 0
      %s28 = sadd.s32 %s27, 1
      %s29 = scalar_select %p26, %s27, %s28
      %p32 = pneg %p26
      %p33 = scmp.eq.s32.totalorder %s17, 1
      %p34 = por %p32, %p33
      %p35 = scmp.ne.s32.totalorder %s27, %s30
      %p36 = scmp.eq.s32.totalorder %s17, 0
      %p37 = por %p35, %p36
      %p38 = scmp.ne.s32.totalorder %s27, %s30
      %p39 = scmp.eq.s32.totalorder %s22, 1
      %p40 = por %p38, %p39
      %p41 = scmp.ne.s32.totalorder %s30, %s31
      %p42 = scmp.eq.s32.totalorder %s22, 0
      %p43 = por %p41, %p42
      %p44 = scmp.ne.s32.totalorder %s30, %s31
      %p45 = scmp.eq.s32.totalorder %s23, 1
      %p46 = por %p44, %p45
      %p48 = scmp.ne.s32.totalorder %s31, %s47
      %p49 = scmp.eq.s32.totalorder %s23, 0
      %p50 = por %p48, %p49
      %s52 = sadd.s32 %s51, 1
      %p55 = scmp.eq.s32.totalorder %s17, 1
      %p56 = scmp.ne.s32.totalorder %s51, %s53
      %p57 = scmp.eq.s32.totalorder %s17, 0
      %p58 = por %p56, %p57
      %p59 = scmp.ne.s32.totalorder %s51, %s53
      %p60 = scmp.eq.s32.totalorder %s22, 1
      %p61 = por %p59, %p60
      %p62 = scmp.ne.s32.totalorder %s53, %s54
      %p63 = scmp.eq.s32.totalorder %s22, 0
      %p64 = por %p62, %p63
      %p65 = scmp.ne.s32.totalorder %s53, %s54
      %p66 = scmp.eq.s32.totalorder %s23, 1
      %p67 = por %p65, %p66
      %p69 = scmp.ne.s32.totalorder %s54, %s68
      %p70 = scmp.eq.s32.totalorder %s23, 0
      %p71 = por %p69, %p70
      %s73 = sadd.s32 %s72, 1
      %p76 = scmp.eq.s32.totalorder %s17, 1
      %p77 = scmp.ne.s32.totalorder %s72, %s74
      %p78 = scmp.eq.s32.totalorder %s17, 0
      %p79 = por %p77, %p78
      %p80 = scmp.ne.s32.totalorder %s72, %s74
      %p81 = scmp.eq.s32.totalorder %s22, 1
      %p82 = por %p80, %p81
      %p83 = scmp.ne.s32.totalorder %s74, %s75
      %p84 = scmp.eq.s32.totalorder %s22, 0
      %p85 = por %p83, %p84
      %p86 = scmp.ne.s32.totalorder %s74, %s75
      %p87 = scmp.eq.s32.totalorder %s23, 1
      %p88 = por %p86, %p87
      %p90 = scmp.ne.s32.totalorder %s75, %s89
      %p91 = scmp.eq.s32.totalorder %s23, 0
      %p92 = por %p90, %p91
      %s94 = sadd.s32 %s93, 1
      %p97 = scmp.eq.s32.totalorder %s17, 1
      %p98 = scmp.ne.s32.totalorder %s93, %s95
      %p99 = scmp.eq.s32.totalorder %s17, 0
      %p100 = por %p98, %p99
      %p101 = scmp.ne.s32.totalorder %s93, %s95
      %p102 = scmp.eq.s32.totalorder %s22, 1
      %p103 = por %p101, %p102
      %p104 = scmp.ne.s32.totalorder %s95, %s96
      %p105 = scmp.eq.s32.totalorder %s22, 0
      %p106 = por %p104, %p105
      %p107 = scmp.ne.s32.totalorder %s95, %s96
      %p108 = scmp.eq.s32.totalorder %s23, 1
      %p109 = por %p107, %p108
      %p111 = scmp.ne.s32.totalorder %s96, %s110
      %p112 = scmp.eq.s32.totalorder %s23, 0
      %p113 = por %p111, %p112
      %s115 = sadd.s32 %s114, 1
      %p118 = scmp.eq.s32.totalorder %s17, 1
      %p119 = scmp.ne.s32.totalorder %s114, %s116
      %p120 = scmp.eq.s32.totalorder %s17, 0
      %p121 = por %p119, %p120
      %p122 = scmp.ne.s32.totalorder %s114, %s116
      %p123 = scmp.eq.s32.totalorder %s22, 1
      %p124 = por %p122, %p123
      %p125 = scmp.ne.s32.totalorder %s116, %s117
      %p126 = scmp.eq.s32.totalorder %s22, 0
      %p127 = por %p125, %p126
      %p128 = scmp.ne.s32.totalorder %s116, %s117
      %p129 = scmp.eq.s32.totalorder %s23, 1
      %p130 = por %p128, %p129
      %p132 = scmp.ne.s32.totalorder %s117, %s131
      %p133 = scmp.eq.s32.totalorder %s23, 0
      %p134 = por %p132, %p133
      %s136 = sadd.s32 %s135, 1
      %p139 = scmp.eq.s32.totalorder %s17, 1
      %p140 = scmp.ne.s32.totalorder %s135, %s137
      %p141 = scmp.eq.s32.totalorder %s17, 0
      %p142 = por %p140, %p141
      %p143 = scmp.ne.s32.totalorder %s135, %s137
      %p144 = scmp.eq.s32.totalorder %s22, 1
      %p145 = por %p143, %p144
      %p146 = scmp.ne.s32.totalorder %s137, %s138
      %p147 = scmp.eq.s32.totalorder %s22, 0
      %p148 = por %p146, %p147
      %p149 = scmp.ne.s32.totalorder %s137, %s138
      %p150 = scmp.eq.s32.totalorder %s23, 1
      %p151 = por %p149, %p150
      %p153 = scmp.ne.s32.totalorder %s138, %s152
      %p154 = scmp.eq.s32.totalorder %s23, 0
      %p155 = por %p153, %p154
      %s157 = sadd.s32 %s156, 1
      %p160 = scmp.eq.s32.totalorder %s17, 1
      %p161 = scmp.ne.s32.totalorder %s156, %s158
      %p162 = scmp.eq.s32.totalorder %s17, 0
      %p163 = por %p161, %p162
      %p164 = scmp.ne.s32.totalorder %s156, %s158
      %p165 = scmp.eq.s32.totalorder %s22, 1
      %p166 = por %p164, %p165
      %p167 = scmp.ne.s32.totalorder %s158, %s159
      %p168 = scmp.eq.s32.totalorder %s22, 0
      %p169 = por %p167, %p168
      %p170 = scmp.ne.s32.totalorder %s158, %s159
      %p171 = scmp.eq.s32.totalorder %s23, 1
      %p172 = por %p170, %p171
      %p174 = scmp.ne.s32.totalorder %s159, %s173
      %p175 = scmp.eq.s32.totalorder %s23, 0
      %p176 = por %p174, %p175
      %s178 = sadd.s32 %s177, 1
      %p181 = scmp.eq.s32.totalorder %s17, 1
      %p182 = scmp.ne.s32.totalorder %s177, %s179
      %p183 = scmp.eq.s32.totalorder %s17, 0
      %p184 = por %p182, %p183
      %p185 = scmp.ne.s32.totalorder %s177, %s179
      %p186 = scmp.eq.s32.totalorder %s22, 1
      %p187 = por %p185, %p186
      %p188 = scmp.ne.s32.totalorder %s179, %s180
      %p189 = scmp.eq.s32.totalorder %s22, 0
      %p190 = por %p188, %p189
      %p191 = scmp.ne.s32.totalorder %s179, %s180
      %p192 = scmp.eq.s32.totalorder %s23, 1
      %p193 = por %p191, %p192
      %p195 = scmp.ne.s32.totalorder %s180, %s194
      %p196 = scmp.eq.s32.totalorder %s23, 0
      %p197 = por %p195, %p196
      %s199 = sadd.s32 %s198, 1
      %p202 = scmp.eq.s32.totalorder %s17, 1
      %p203 = scmp.ne.s32.totalorder %s198, %s200
      %p204 = scmp.eq.s32.totalorder %s17, 0
      %p205 = por %p203, %p204
      %p206 = scmp.ne.s32.totalorder %s198, %s200
      %p207 = scmp.eq.s32.totalorder %s22, 1
      %p208 = por %p206, %p207
      %p209 = scmp.ne.s32.totalorder %s200, %s201
      %p210 = scmp.eq.s32.totalorder %s22, 0
      %p211 = por %p209, %p210
      %p212 = scmp.ne.s32.totalorder %s200, %s201
      %p213 = scmp.eq.s32.totalorder %s23, 1
      %p214 = por %p212, %p213
      %p216 = scmp.ne.s32.totalorder %s201, %s215
      %p217 = scmp.eq.s32.totalorder %s23, 0
      %p218 = por %p216, %p217
      %s220 = sadd.s32 %s219, 1
      %p223 = scmp.eq.s32.totalorder %s17, 1
      %p224 = scmp.ne.s32.totalorder %s219, %s221
      %p225 = scmp.eq.s32.totalorder %s17, 0
      %p226 = por %p224, %p225
      %p227 = scmp.ne.s32.totalorder %s219, %s221
      %p228 = scmp.eq.s32.totalorder %s22, 1
      %p229 = por %p227, %p228
      %p230 = scmp.ne.s32.totalorder %s221, %s222
      %p231 = scmp.eq.s32.totalorder %s22, 0
      %p232 = por %p230, %p231
      %p233 = scmp.ne.s32.totalorder %s221, %s222
      %p234 = scmp.eq.s32.totalorder %s23, 1
      %p235 = por %p233, %p234
      %p237 = scmp.ne.s32.totalorder %s222, %s236
      %p238 = scmp.eq.s32.totalorder %s23, 0
      %p239 = por %p237, %p238
      %s240 = ssub.s32 %s17, %s24
      %p241 = scmp.eq.s32.totalorder %s240, 0
      %s243 = sadd.s32 %s242, 1
      %s244 = scalar_select %p241, %s242, %s243
      %p247 = pneg %p241
      %p248 = scmp.eq.s32.totalorder %s17, 1
      %p249 = por %p247, %p248
      %p250 = scmp.ne.s32.totalorder %s242, %s245
      %p251 = scmp.eq.s32.totalorder %s17, 0
      %p252 = por %p250, %p251
      %p253 = scmp.ne.s32.totalorder %s242, %s245
      %p254 = scmp.eq.s32.totalorder %s22, 1
      %p255 = por %p253, %p254
      %p256 = scmp.ne.s32.totalorder %s245, %s246
      %p257 = scmp.eq.s32.totalorder %s22, 0
      %p258 = por %p256, %p257
      %p259 = scmp.ne.s32.totalorder %s245, %s246
      %p260 = scmp.eq.s32.totalorder %s23, 1
      %p261 = por %p259, %p260
      %p263 = scmp.ne.s32.totalorder %s246, %s262
      %p264 = scmp.eq.s32.totalorder %s23, 0
      %p265 = por %p263, %p264
      %p266 = scmp.le.s32.totalorder 1, %s17
      %p267 = scmp.lt.s32.totalorder %s17, 3
      %p268 = pnand %p266, %p267
      %p269 = pneg %p268
      // Predicated region
      $region9: #{srbw1_forward.1} parent=5 // pred_check
        _
      $region10: #{srbw1_forward.1} parent=5 // pred_check_branch
        %271 = sbr.rel (%p268) target = $region12
      $region11: #{srbw1_forward.1} parent=5 // pred_region
        %s272 = ssub.s32 %s17, 1
        // Predicated region
        $region13: #{srbw1_forward.1} parent=11 // pred_check
          %p273 = pneg %p64
        $region14: #{srbw1_forward.1} parent=11 // pred_check_branch
          %275 = sbr.rel (%p273) target = $region16
        $region15: #{srbw1_forward.1} parent=11 // pred_region
          _
        $region16: #{srbw1_forward.1} parent=11 // pred_fallthru
          _
        // Predicated region
        $region17: #{srbw1_forward.1} parent=11 // pred_check
          %p276 = pneg %p85
        $region18: #{srbw1_forward.1} parent=11 // pred_check_branch
          %278 = sbr.rel (%p276) target = $region20
        $region19: #{srbw1_forward.1} parent=11 // pred_region
          _
        $region20: #{srbw1_forward.1} parent=11 // pred_fallthru
          _
        // Predicated region
        $region21: #{srbw1_forward.1} parent=11 // pred_check
          %p279 = pneg %p106
        $region22: #{srbw1_forward.1} parent=11 // pred_check_branch
          %281 = sbr.rel (%p279) target = $region24
        $region23: #{srbw1_forward.1} parent=11 // pred_region
          _
        $region24: #{srbw1_forward.1} parent=11 // pred_fallthru
          _
        // Predicated region
        $region25: #{srbw1_forward.1} parent=11 // pred_check
          %p282 = pneg %p127
        $region26: #{srbw1_forward.1} parent=11 // pred_check_branch
          %284 = sbr.rel (%p282) target = $region28
        $region27: #{srbw1_forward.1} parent=11 // pred_region
          _
        $region28: #{srbw1_forward.1} parent=11 // pred_fallthru
          _
        // Predicated region
        $region29: #{srbw1_forward.1} parent=11 // pred_check
          %p285 = pneg %p148
        $region30: #{srbw1_forward.1} parent=11 // pred_check_branch
          %287 = sbr.rel (%p285) target = $region32
        $region31: #{srbw1_forward.1} parent=11 // pred_region
          _
        $region32: #{srbw1_forward.1} parent=11 // pred_fallthru
          _
        // Predicated region
        $region33: #{srbw1_forward.1} parent=11 // pred_check
          %p288 = pneg %p169
        $region34: #{srbw1_forward.1} parent=11 // pred_check_branch
          %290 = sbr.rel (%p288) target = $region36
        $region35: #{srbw1_forward.1} parent=11 // pred_region
          _
        $region36: #{srbw1_forward.1} parent=11 // pred_fallthru
          _
        // Predicated region
        $region37: #{srbw1_forward.1} parent=11 // pred_check
          %p291 = pneg %p190
        $region38: #{srbw1_forward.1} parent=11 // pred_check_branch
          %293 = sbr.rel (%p291) target = $region40
        $region39: #{srbw1_forward.1} parent=11 // pred_region
          _
        $region40: #{srbw1_forward.1} parent=11 // pred_fallthru
          _
        // Predicated region
        $region41: #{srbw1_forward.1} parent=11 // pred_check
          %p294 = pneg %p211
        $region42: #{srbw1_forward.1} parent=11 // pred_check_branch
          %296 = sbr.rel (%p294) target = $region44
        $region43: #{srbw1_forward.1} parent=11 // pred_region
          _
        $region44: #{srbw1_forward.1} parent=11 // pred_fallthru
          _
        // Predicated region
        $region45: #{srbw1_forward.1} parent=11 // pred_check
          %p297 = pneg %p232
        $region46: #{srbw1_forward.1} parent=11 // pred_check_branch
          %299 = sbr.rel (%p297) target = $region48
        $region47: #{srbw1_forward.1} parent=11 // pred_region
          %301 = vsyncadd [#allocation3], 0
          %s303 = sshll.u32 %s9, 4
          %s304 = int_to_ptr.vmem [resolvable:$true] %s303
          %306 = dma.vmem_to_smem %s304, 16, [#allocation2], [#allocation3]
        $region48: #{srbw1_forward.1} parent=11 // pred_fallthru
          _
      $region12: #{srbw1_forward.1} parent=5 // pred_fallthru
        _
      %p307 = scmp.lt.s32.totalorder %s17, 2
      // Predicated region
      $region49: #{srbw1_forward.1} parent=5 // pred_check
        %p308 = pneg %p307
      $region50: #{srbw1_forward.1} parent=5 // pred_check_branch
        %310 = sbr.rel (%p308) target = $region52
      $region51: #{srbw1_forward.1} parent=5 // pred_region
        // Predicated region
        $region53: #{srbw1_forward.1} parent=51 // pred_check
          %p311 = pneg %p37
        $region54: #{srbw1_forward.1} parent=51 // pred_check_branch
          %313 = sbr.rel (%p311) target = $region56
        $region55: #{srbw1_forward.1} parent=51 // pred_region
          %p314 = scmp.lt.s32.totalorder %s17, 1
          %s315 = scalar_select %p314, %s17, 1
          %s316 = smul.addr %s315, 6
          %s317 = smul.addr %s316, 8
          %s318 = scalar_lea.vmem %s0, %s317
        $region56: #{srbw1_forward.1} parent=51 // pred_fallthru
          _
      $region52: #{srbw1_forward.1} parent=5 // pred_fallthru
        _
      %p319 = scmp.le.s32.totalorder 1, %s17
      %p320 = scmp.lt.s32.totalorder %s17, 3
      %p321 = pnand %p319, %p320
      %p322 = pneg %p321
      // Predicated region
      $region57: #{srbw1_forward.1} parent=5 // pred_check
        _
      $region58: #{srbw1_forward.1} parent=5 // pred_check_branch
        %324 = sbr.rel (%p321) target = $region60
      $region59: #{srbw1_forward.1} parent=5 // pred_region
        %s325 = ssub.s32 %s17, 1
        // Predicated region
        $region61: #{srbw1_forward.1} parent=59 // pred_check
          %p326 = pneg %p232
        $region62: #{srbw1_forward.1} parent=59 // pred_check_branch
          %328 = sbr.rel (%p326) target = $region64
        $region63: #{srbw1_forward.1} parent=59 // pred_region
          %330 = dma.done [#allocation3], 16
        $region64: #{srbw1_forward.1} parent=59 // pred_fallthru
          _
        %331 = sfence
        %p332 = scmp.lt.s32.totalorder %s22, 1
        %s333 = scalar_select %p332, %s22, 1
        %s334 = smul.addr %s333, 6
        %s335 = smul.addr %s334, 8
        %s336 = scalar_lea.vmem %s0, %s335
        %p337 = pneg %p43
        %p338 = pneg %p40
        %p339 = pneg %p64
        %p340 = pneg %p61
        %p341 = pneg %p85
        %p342 = pneg %p82
        %p343 = pneg %p106
        %p344 = pneg %p103
        %p345 = pneg %p127
        %p346 = pneg %p124
        %p347 = pneg %p148
        %p348 = pneg %p145
        %p349 = pneg %p169
        %p350 = pneg %p166
        %p351 = pneg %p190
        %p352 = pneg %p187
        %p353 = pneg %p211
        %p354 = pneg %p208
        %p355 = pneg %p232
        %p356 = pneg %p229
        %p357 = pneg %p258
        %p358 = pneg %p255
        %p359 = scmp.lt.s32.totalorder %s22, 1
        %s360 = scalar_select %p359, %s22, 1
        %s361 = smul.addr %s360, 6
        %s362 = smul.addr %s361, 8
        %s363 = scalar_lea.vmem %s10, %s362
        %p364 = scmp.lt.s32.totalorder %s22, 1
        %s365 = scalar_select %p364, %s22, 1
        %s366 = smul.addr %s365, 6
        %s367 = smul.addr %s366, 8
        %s368 = scalar_lea.vmem %s0, %s367
        %p369 = scmp.lt.s32.totalorder %s22, 1
        %s370 = scalar_select %p369, %s22, 1
        %s371 = smul.addr %s370, 6
        %s372 = smul.addr %s371, 8
        %s373 = scalar_lea.vmem %s10, %s372
        %v374 = vld [vmem:[%s368] sm:$0xff]
        %v375 = vld [vmem:[%s368 + $0x8] sm:$0xff]
        %v376 = vld [vmem:[%s368 + $0x10] sm:$0xff]
        %v377 = vld [vmem:[%s368 + $0x18] sm:$0xff]
        %v378 = vld [vmem:[%s368 + $0x20] sm:$0xff]
        %v379 = vld [vmem:[%s368 + $0x28] sm:$0xff]
        %v380 = vld [vmem:[%s1] sm:$0xff]
        %v381 = vld [vmem:[%s1 + $0x8] sm:$0xff]
        %v382 = vld [vmem:[%s1 + $0x10] sm:$0xff]
        %v383 = vld [vmem:[%s1 + $0x18] sm:$0xff]
        %v384 = vld [vmem:[%s1 + $0x20] sm:$0xff]
        %v385 = vld [vmem:[%s1 + $0x28] sm:$0xff]
        %v386 = vld [vmem:[%s1 + $0x30] sm:$0xff]
        %v387 = vld [vmem:[%s1 + $0x38] sm:$0xf]
        %v388 = vld [vmem:[%s2] sm:$0xff]
        %v389 = vld [vmem:[%s2 + $0x8] sm:$0xff]
        %v390 = vld [vmem:[%s2 + $0x10] sm:$0xff]
        %v391 = vld [vmem:[%s2 + $0x18] sm:$0xff]
        %v392 = vld [vmem:[%s2 + $0x20] sm:$0xff]
        %v393 = vld [vmem:[%s2 + $0x28] sm:$0xff]
        %v394 = vld [vmem:[%s2 + $0x30] sm:$0xff]
        %v395 = vld [vmem:[%s2 + $0x38] sm:$0xf]
        %397 = vset.pattern.permute.xlu0 0
        %398 = vperm.xlu0 %397, %v388
        %v399 = vpop.permute.xlu0 %398
        %402 = vset.pattern.permute.xlu0 0
        %403 = vperm.xlu0 %402, %v389
        %v404 = vpop.permute.xlu0 %403
        %407 = vset.pattern.permute.xlu0 0
        %408 = vperm.xlu0 %407, %v390
        %v409 = vpop.permute.xlu0 %408
        %412 = vset.pattern.permute.xlu0 0
        %413 = vperm.xlu0 %412, %v391
        %v414 = vpop.permute.xlu0 %413
        %417 = vset.pattern.permute.xlu0 0
        %418 = vperm.xlu0 %417, %v392
        %v419 = vpop.permute.xlu0 %418
        %422 = vset.pattern.permute.xlu0 0
        %423 = vperm.xlu0 %422, %v393
        %v424 = vpop.permute.xlu0 %423
        %427 = vset.pattern.permute.xlu0 0
        %428 = vperm.xlu0 %427, %v394
        %v429 = vpop.permute.xlu0 %428
        %432 = vset.pattern.permute.xlu0 0
        %433 = vperm.xlu0 %432, %v395
        %v434 = vpop.permute.xlu0 %433
        %vm436 = vcmask 195584
        %v438 = vsel %vm436, %v380, 0
        %v441 = vsel %vm436, %v381, 0
        %v444 = vsel %vm436, %v382, 0
        %v447 = vsel %vm436, %v383, 0
        %v450 = vsel %vm436, %v384, 0
        %v453 = vsel %vm436, %v385, 0
        %v456 = vsel %vm436, %v386, 0
        %v459 = vsel %vm436, %v387, 0
        %461 = vmatpush.msra.mxu0 0.0
        %462 = vmatpush.msra.mxu0 0.0
        %463 = vmatpush.msra.mxu0 0.0
        %464 = vmatpush.msra.mxu0 0.0
        %465 = vmatpush.msra.mxu0 0.0
        %466 = vmatpush.msra.mxu0 0.0
        %467 = vmatpush.msra.mxu0 0.0
        %468 = vmatpush.msra.mxu0 0.0
        %469 = vmatpush.msra.mxu0 0.0
        %470 = vmatpush.msra.mxu0 0.0
        %471 = vmatpush.msra.mxu0 0.0
        %472 = vmatpush.msra.mxu0 0.0
        %473 = vmatpush.msra.mxu0 0.0
        %474 = vmatpush.msra.mxu0 %v378
        %475 = vmatpush.msra.mxu0 %v376
        %476 = vmatpush.msra.mxu0 %v374
        %477 = vmatmul.f32.gmra.mxu0 %v438
        %v478 = vpop.f32.mrf.mxu0
        %v479 = vadd.f32 %v399, %v478
        %480 = vmatmul.f32.gmra.mxu0 %v441
        %v481 = vpop.f32.mrf.mxu0
        %v482 = vadd.f32 %v404, %v481
        %483 = vmatmul.f32.gmra.mxu0 %v444
        %v484 = vpop.f32.mrf.mxu0
        %v485 = vadd.f32 %v409, %v484
        %486 = vmatmul.f32.gmra.mxu0 %v447
        %v487 = vpop.f32.mrf.mxu0
        %v488 = vadd.f32 %v414, %v487
        %489 = vmatmul.f32.gmra.mxu0 %v450
        %v490 = vpop.f32.mrf.mxu0
        %v491 = vadd.f32 %v419, %v490
        %492 = vmatmul.f32.gmra.mxu0 %v453
        %v493 = vpop.f32.mrf.mxu0
        %v494 = vadd.f32 %v424, %v493
        %495 = vmatmul.f32.gmra.mxu0 %v456
        %v496 = vpop.f32.mrf.mxu0
        %v497 = vadd.f32 %v429, %v496
        %498 = vmatmul.f32.gmra.mxu0 %v459
        %v499 = vpop.f32.mrf.mxu0
        %v500 = vadd.f32 %v434, %v499
        %501 = vdwg.mxu0
        %502 = vmatpush.msra.mxu0 0.0
        %503 = vmatpush.msra.mxu0 0.0
        %504 = vmatpush.msra.mxu0 0.0
        %505 = vmatpush.msra.mxu0 0.0
        %506 = vmatpush.msra.mxu0 0.0
        %507 = vmatpush.msra.mxu0 0.0
        %508 = vmatpush.msra.mxu0 0.0
        %509 = vmatpush.msra.mxu0 0.0
        %510 = vmatpush.msra.mxu0 0.0
        %511 = vmatpush.msra.mxu0 0.0
        %512 = vmatpush.msra.mxu0 0.0
        %513 = vmatpush.msra.mxu0 0.0
        %514 = vmatpush.msra.mxu0 0.0
        %515 = vmatpush.msra.mxu0 %v379
        %516 = vmatpush.msra.mxu0 %v377
        %517 = vmatpush.msra.mxu0 %v375
        %518 = vmatmul.f32.gmra.mxu0 %v438
        %v519 = vpop.f32.mrf.mxu0
        %v520 = vadd.f32 %v399, %v519
        %521 = vmatmul.f32.gmra.mxu0 %v441
        %v522 = vpop.f32.mrf.mxu0
        %v523 = vadd.f32 %v404, %v522
        %524 = vmatmul.f32.gmra.mxu0 %v444
        %v525 = vpop.f32.mrf.mxu0
        %v526 = vadd.f32 %v409, %v525
        %527 = vmatmul.f32.gmra.mxu0 %v447
        %v528 = vpop.f32.mrf.mxu0
        %v529 = vadd.f32 %v414, %v528
        %530 = vmatmul.f32.gmra.mxu0 %v450
        %v531 = vpop.f32.mrf.mxu0
        %v532 = vadd.f32 %v419, %v531
        %533 = vmatmul.f32.gmra.mxu0 %v453
        %v534 = vpop.f32.mrf.mxu0
        %v535 = vadd.f32 %v424, %v534
        %536 = vmatmul.f32.gmra.mxu0 %v456
        %v537 = vpop.f32.mrf.mxu0
        %v538 = vadd.f32 %v429, %v537
        %539 = vmatmul.f32.gmra.mxu0 %v459
        %v540 = vpop.f32.mrf.mxu0
        %v541 = vadd.f32 %v434, %v540
        %542 = vdwg.mxu0
        %v543 = vmax.f32 %v479, 0.0
        %v544 = vmax.f32 %v520, 0.0
        %v545 = vmax.f32 %v482, 0.0
        %v546 = vmax.f32 %v523, 0.0
        %v547 = vmax.f32 %v485, 0.0
        %v548 = vmax.f32 %v526, 0.0
        %v549 = vmax.f32 %v488, 0.0
        %v550 = vmax.f32 %v529, 0.0
        %v551 = vmax.f32 %v491, 0.0
        %v552 = vmax.f32 %v532, 0.0
        %v553 = vmax.f32 %v494, 0.0
        %v554 = vmax.f32 %v535, 0.0
        %v555 = vmax.f32 %v497, 0.0
        %v556 = vmax.f32 %v538, 0.0
        %v557 = vmax.f32 %v500, 0.0
        %v558 = vmax.f32 %v541, 0.0
        %v559 = vld [vmem:[%s3] sm:$0xff]
        %v560 = vld [vmem:[%s3 + $0x8] sm:$0xf]
        %v561 = vld [vmem:[%s4] sm:$0xff]
        %v562 = vld [vmem:[%s4 + $0x8] sm:$0xf]
        %564 = vset.pattern.permute.xlu0 0
        %565 = vperm.xlu0 %564, %v561
        %v566 = vpop.permute.xlu0 %565
        %569 = vset.pattern.permute.xlu0 0
        %570 = vperm.xlu0 %569, %v562
        %v571 = vpop.permute.xlu0 %570
        %vm573 = vcmask 490496
        %v575 = vsel %vm573, %v559, 0
        %v578 = vsel %vm573, %v560, 0
        %vm580 = vcmask 1043456
        %v582 = vsel %vm580, %v557, 0
        %v585 = vsel %vm580, %v558, 0
        %587 = vmatpush.msra.mxu0 0.0
        %588 = vmatpush.msra.mxu0 0.0
        %589 = vmatpush.msra.mxu0 0.0
        %590 = vmatpush.msra.mxu0 0.0
        %591 = vmatpush.msra.mxu0 0.0
        %592 = vmatpush.msra.mxu0 0.0
        %593 = vmatpush.msra.mxu0 0.0
        %594 = vmatpush.msra.mxu0 0.0
        %595 = vmatpush.msra.mxu0 %v582
        %596 = vmatpush.msra.mxu0 %v555
        %597 = vmatpush.msra.mxu0 %v553
        %598 = vmatpush.msra.mxu0 %v551
        %599 = vmatpush.msra.mxu0 %v549
        %600 = vmatpush.msra.mxu0 %v547
        %601 = vmatpush.msra.mxu0 %v545
        %602 = vmatpush.msra.mxu0 %v543
        %603 = vmatmul.f32.gmra.mxu0 %v575
        %v604 = vpop.f32.mrf.mxu0
        %v605 = vadd.f32 %v566, %v604
        %606 = vmatmul.f32.gmra.mxu0 %v578
        %v607 = vpop.f32.mrf.mxu0
        %v608 = vadd.f32 %v571, %v607
        %609 = vdwg.mxu0
        %610 = vmatpush.msra.mxu0 0.0
        %611 = vmatpush.msra.mxu0 0.0
        %612 = vmatpush.msra.mxu0 0.0
        %613 = vmatpush.msra.mxu0 0.0
        %614 = vmatpush.msra.mxu0 0.0
        %615 = vmatpush.msra.mxu0 0.0
        %616 = vmatpush.msra.mxu0 0.0
        %617 = vmatpush.msra.mxu0 0.0
        %618 = vmatpush.msra.mxu0 %v585
        %619 = vmatpush.msra.mxu0 %v556
        %620 = vmatpush.msra.mxu0 %v554
        %621 = vmatpush.msra.mxu0 %v552
        %622 = vmatpush.msra.mxu0 %v550
        %623 = vmatpush.msra.mxu0 %v548
        %624 = vmatpush.msra.mxu0 %v546
        %625 = vmatpush.msra.mxu0 %v544
        %626 = vmatmul.f32.gmra.mxu0 %v575
        %v627 = vpop.f32.mrf.mxu0
        %v628 = vadd.f32 %v566, %v627
        %629 = vmatmul.f32.gmra.mxu0 %v578
        %v630 = vpop.f32.mrf.mxu0
        %v631 = vadd.f32 %v571, %v630
        %632 = vdwg.mxu0
        %v633 = vld [vmem:[%s8] sm:$0xff]
        %v634 = vld [vmem:[%s8 + $0x8] sm:$0xff]
        %v635 = vld [vmem:[%s8 + $0x10] sm:$0x1]
        %v636 = vld [vmem:[%s8 + $0x18] sm:$0x1]
        %637 = vrot.lane.b32.xlu0 %v605, 17
        %v638 = vpop.permute.xlu0 %637
        %639 = vrot.lane.b32.xlu0 %v608, 17
        %v640 = vpop.permute.xlu0 %639
        %641 = vrot.lane.b32.xlu0 %v628, 17
        %v642 = vpop.permute.xlu0 %641
        %643 = vrot.lane.b32.xlu0 %v631, 17
        %v644 = vpop.permute.xlu0 %643
        %v645 = vlaneseq
        %v646 = vand.u32 %v645, 127
        %vm647 = vcmp.lt.s32.totalorder %v646, 17
        %v648 = vsel %vm647, %v638, %v642
        %v649 = vsel %vm647, %v640, %v644
        %v650 = vsel %vm647, %v642, %v638
        %v651 = vsel %vm647, %v644, %v640
        %v652 = vperm.slane %v633, 0
        %v653 = vperm.slane %v634, 0
        %v654 = vmul.f32 %v650, %v652
        %v655 = vmul.f32 %v648, %v653
        %v656 = vmul.f32 %v651, %v652
        %v657 = vmul.f32 %v649, %v653
        %v658 = vld [vmem:[%s5] sm:$0xff]
        %v659 = vld [vmem:[%s5 + $0x8] sm:$0xff]
        %v660 = vld [vmem:[%s5 + $0x10] sm:$0xff]
        %661 = vrot.lane.b32.xlu0 %v605, 16
        %v662 = vpop.permute.xlu0 %661
        %663 = vrot.lane.b32.xlu0 %v608, 16
        %v664 = vpop.permute.xlu0 %663
        %665 = vrot.lane.b32.xlu0 %v628, 16
        %v666 = vpop.permute.xlu0 %665
        %667 = vrot.lane.b32.xlu0 %v631, 16
        %v668 = vpop.permute.xlu0 %667
        %vm669 = vcmp.lt.s32.totalorder %v646, 16
        %v670 = vsel %vm669, %v662, %v666
        %v671 = vsel %vm669, %v664, %v668
        %v672 = vsel %vm669, %v666, %v662
        %v673 = vsel %vm669, %v668, %v664
        %v674 = vperm.slane %v633, 1
        %v675 = vperm.slane %v634, 1
        %v676 = vmul.f32 %v672, %v674
        %v677 = vmul.f32 %v670, %v675
        %v678 = vmul.f32 %v673, %v674
        %v679 = vmul.f32 %v671, %v675
        %s680 = scalar_lea.vmem %s5, 24
        %v681 = vld [vmem:[%s680] sm:$0xff]
        %v682 = vld [vmem:[%s680 + $0x8] sm:$0xff]
        %v683 = vld [vmem:[%s680 + $0x10] sm:$0xff]
        %vm684 = vcmask 97280
        %v686 = vsel %vm684, %v681, 0
        %v689 = vsel %vm684, %v682, 0
        %v692 = vsel %vm684, %v683, 0
        %v695 = vsel %vm580, %v678, 0
        %v698 = vsel %vm580, %v679, 0
        %700 = vmatpush.msra.mxu0 0.0
        %701 = vmatpush.msra.mxu0 0.0
        %702 = vmatpush.msra.mxu0 0.0
        %703 = vmatpush.msra.mxu0 0.0
        %704 = vmatpush.msra.mxu0 0.0
        %705 = vmatpush.msra.mxu0 0.0
        %706 = vmatpush.msra.mxu0 0.0
        %707 = vmatpush.msra.mxu0 0.0
        %708 = vmatpush.msra.mxu0 0.0
        %709 = vmatpush.msra.mxu0 0.0
        %710 = vmatpush.msra.mxu0 0.0
        %711 = vmatpush.msra.mxu0 0.0
        %712 = vmatpush.msra.mxu0 0.0
        %713 = vmatpush.msra.mxu0 0.0
        %714 = vmatpush.msra.mxu0 %v695
        %715 = vmatpush.msra.mxu0 %v676
        %716 = vmatmul.f32.gmra.mxu0 %v686
        %v717 = vpop.f32.mrf.mxu0
        %v718 = vadd.f32 0.0, %v717
        %719 = vmatmul.f32.gmra.mxu0 %v689
        %v720 = vpop.f32.mrf.mxu0
        %v721 = vadd.f32 0.0, %v720
        %722 = vmatmul.f32.gmra.mxu0 %v692
        %v723 = vpop.f32.mrf.mxu0
        %v724 = vadd.f32 0.0, %v723
        %725 = vdwg.mxu0
        %726 = vmatpush.msra.mxu0 0.0
        %727 = vmatpush.msra.mxu0 0.0
        %728 = vmatpush.msra.mxu0 0.0
        %729 = vmatpush.msra.mxu0 0.0
        %730 = vmatpush.msra.mxu0 0.0
        %731 = vmatpush.msra.mxu0 0.0
        %732 = vmatpush.msra.mxu0 0.0
        %733 = vmatpush.msra.mxu0 0.0
        %734 = vmatpush.msra.mxu0 0.0
        %735 = vmatpush.msra.mxu0 0.0
        %736 = vmatpush.msra.mxu0 0.0
        %737 = vmatpush.msra.mxu0 0.0
        %738 = vmatpush.msra.mxu0 0.0
        %739 = vmatpush.msra.mxu0 0.0
        %740 = vmatpush.msra.mxu0 %v698
        %741 = vmatpush.msra.mxu0 %v677
        %742 = vmatmul.f32.gmra.mxu0 %v686
        %v743 = vpop.f32.mrf.mxu0
        %v744 = vadd.f32 0.0, %v743
        %745 = vmatmul.f32.gmra.mxu0 %v689
        %v746 = vpop.f32.mrf.mxu0
        %v747 = vadd.f32 0.0, %v746
        %748 = vmatmul.f32.gmra.mxu0 %v692
        %v749 = vpop.f32.mrf.mxu0
        %v750 = vadd.f32 0.0, %v749
        %751 = vdwg.mxu0
        %v753 = vsel %vm684, %v658, 0
        %v756 = vsel %vm684, %v659, 0
        %v759 = vsel %vm684, %v660, 0
        %v762 = vsel %vm580, %v656, 0
        %v765 = vsel %vm580, %v657, 0
        %767 = vmatpush.msra.mxu0 0.0
        %768 = vmatpush.msra.mxu0 0.0
        %769 = vmatpush.msra.mxu0 0.0
        %770 = vmatpush.msra.mxu0 0.0
        %771 = vmatpush.msra.mxu0 0.0
        %772 = vmatpush.msra.mxu0 0.0
        %773 = vmatpush.msra.mxu0 0.0
        %774 = vmatpush.msra.mxu0 0.0
        %775 = vmatpush.msra.mxu0 0.0
        %776 = vmatpush.msra.mxu0 0.0
        %777 = vmatpush.msra.mxu0 0.0
        %778 = vmatpush.msra.mxu0 0.0
        %779 = vmatpush.msra.mxu0 0.0
        %780 = vmatpush.msra.mxu0 0.0
        %781 = vmatpush.msra.mxu0 %v762
        %782 = vmatpush.msra.mxu0 %v654
        %783 = vmatmul.f32.gmra.mxu0 %v753
        %v784 = vpop.f32.mrf.mxu0
        %v785 = vadd.f32 %v718, %v784
        %786 = vmatmul.f32.gmra.mxu0 %v756
        %v787 = vpop.f32.mrf.mxu0
        %v788 = vadd.f32 %v721, %v787
        %789 = vmatmul.f32.gmra.mxu0 %v759
        %v790 = vpop.f32.mrf.mxu0
        %v791 = vadd.f32 %v724, %v790
        %792 = vdwg.mxu0
        %793 = vmatpush.msra.mxu0 0.0
        %794 = vmatpush.msra.mxu0 0.0
        %795 = vmatpush.msra.mxu0 0.0
        %796 = vmatpush.msra.mxu0 0.0
        %797 = vmatpush.msra.mxu0 0.0
        %798 = vmatpush.msra.mxu0 0.0
        %799 = vmatpush.msra.mxu0 0.0
        %800 = vmatpush.msra.mxu0 0.0
        %801 = vmatpush.msra.mxu0 0.0
        %802 = vmatpush.msra.mxu0 0.0
        %803 = vmatpush.msra.mxu0 0.0
        %804 = vmatpush.msra.mxu0 0.0
        %805 = vmatpush.msra.mxu0 0.0
        %806 = vmatpush.msra.mxu0 0.0
        %807 = vmatpush.msra.mxu0 %v765
        %808 = vmatpush.msra.mxu0 %v655
        %809 = vmatmul.f32.gmra.mxu0 %v753
        %v810 = vpop.f32.mrf.mxu0
        %v811 = vadd.f32 %v744, %v810
        %812 = vmatmul.f32.gmra.mxu0 %v756
        %v813 = vpop.f32.mrf.mxu0
        %v814 = vadd.f32 %v747, %v813
        %815 = vmatmul.f32.gmra.mxu0 %v759
        %v816 = vpop.f32.mrf.mxu0
        %v817 = vadd.f32 %v750, %v816
        %818 = vdwg.mxu0
        %819 = vrot.lane.b32.xlu0 %v605, 15
        %v820 = vpop.permute.xlu0 %819
        %821 = vrot.lane.b32.xlu0 %v608, 15
        %v822 = vpop.permute.xlu0 %821
        %823 = vrot.lane.b32.xlu0 %v628, 15
        %v824 = vpop.permute.xlu0 %823
        %825 = vrot.lane.b32.xlu0 %v631, 15
        %v826 = vpop.permute.xlu0 %825
        %vm827 = vcmp.lt.s32.totalorder %v646, 15
        %v828 = vsel %vm827, %v820, %v824
        %v829 = vsel %vm827, %v822, %v826
        %v830 = vsel %vm827, %v824, %v820
        %v831 = vsel %vm827, %v826, %v822
        %v832 = vperm.slane %v633, 2
        %v833 = vperm.slane %v634, 2
        %v834 = vmul.f32 %v830, %v832
        %v835 = vmul.f32 %v828, %v833
        %v836 = vmul.f32 %v831, %v832
        %v837 = vmul.f32 %v829, %v833
        %s838 = scalar_lea.vmem %s5, 48
        %v839 = vld [vmem:[%s838] sm:$0xff]
        %v840 = vld [vmem:[%s838 + $0x8] sm:$0xff]
        %v841 = vld [vmem:[%s838 + $0x10] sm:$0xff]
        %v843 = vsel %vm684, %v839, 0
        %v846 = vsel %vm684, %v840, 0
        %v849 = vsel %vm684, %v841, 0
        %v852 = vsel %vm580, %v836, 0
        %v855 = vsel %vm580, %v837, 0
        %857 = vmatpush.msra.mxu0 0.0
        %858 = vmatpush.msra.mxu0 0.0
        %859 = vmatpush.msra.mxu0 0.0
        %860 = vmatpush.msra.mxu0 0.0
        %861 = vmatpush.msra.mxu0 0.0
        %862 = vmatpush.msra.mxu0 0.0
        %863 = vmatpush.msra.mxu0 0.0
        %864 = vmatpush.msra.mxu0 0.0
        %865 = vmatpush.msra.mxu0 0.0
        %866 = vmatpush.msra.mxu0 0.0
        %867 = vmatpush.msra.mxu0 0.0
        %868 = vmatpush.msra.mxu0 0.0
        %869 = vmatpush.msra.mxu0 0.0
        %870 = vmatpush.msra.mxu0 0.0
        %871 = vmatpush.msra.mxu0 %v852
        %872 = vmatpush.msra.mxu0 %v834
        %873 = vmatmul.f32.gmra.mxu0 %v843
        %v874 = vpop.f32.mrf.mxu0
        %v875 = vadd.f32 0.0, %v874
        %876 = vmatmul.f32.gmra.mxu0 %v846
        %v877 = vpop.f32.mrf.mxu0
        %v878 = vadd.f32 0.0, %v877
        %879 = vmatmul.f32.gmra.mxu0 %v849
        %v880 = vpop.f32.mrf.mxu0
        %v881 = vadd.f32 0.0, %v880
        %882 = vdwg.mxu0
        %883 = vmatpush.msra.mxu0 0.0
        %884 = vmatpush.msra.mxu0 0.0
        %885 = vmatpush.msra.mxu0 0.0
        %886 = vmatpush.msra.mxu0 0.0
        %887 = vmatpush.msra.mxu0 0.0
        %888 = vmatpush.msra.mxu0 0.0
        %889 = vmatpush.msra.mxu0 0.0
        %890 = vmatpush.msra.mxu0 0.0
        %891 = vmatpush.msra.mxu0 0.0
        %892 = vmatpush.msra.mxu0 0.0
        %893 = vmatpush.msra.mxu0 0.0
        %894 = vmatpush.msra.mxu0 0.0
        %895 = vmatpush.msra.mxu0 0.0
        %896 = vmatpush.msra.mxu0 0.0
        %897 = vmatpush.msra.mxu0 %v855
        %898 = vmatpush.msra.mxu0 %v835
        %899 = vmatmul.f32.gmra.mxu0 %v843
        %v900 = vpop.f32.mrf.mxu0
        %v901 = vadd.f32 0.0, %v900
        %902 = vmatmul.f32.gmra.mxu0 %v846
        %v903 = vpop.f32.mrf.mxu0
        %v904 = vadd.f32 0.0, %v903
        %905 = vmatmul.f32.gmra.mxu0 %v849
        %v906 = vpop.f32.mrf.mxu0
        %v907 = vadd.f32 0.0, %v906
        %908 = vdwg.mxu0
        %v909 = vadd.f32 %v785, %v875
        %v910 = vadd.f32 %v811, %v901
        %v911 = vadd.f32 %v788, %v878
        %v912 = vadd.f32 %v814, %v904
        %v913 = vadd.f32 %v791, %v881
        %v914 = vadd.f32 %v817, %v907
        %915 = vrot.lane.b32.xlu0 %v605, 1
        %v916 = vpop.permute.xlu0 %915
        %917 = vrot.lane.b32.xlu0 %v608, 1
        %v918 = vpop.permute.xlu0 %917
        %919 = vrot.lane.b32.xlu0 %v628, 1
        %v920 = vpop.permute.xlu0 %919
        %921 = vrot.lane.b32.xlu0 %v631, 1
        %v922 = vpop.permute.xlu0 %921
        %vm923 = vcmp.lt.s32.totalorder %v646, 1
        %v924 = vsel %vm923, %v916, %v920
        %v925 = vsel %vm923, %v918, %v922
        %v926 = vsel %vm923, %v920, %v916
        %v927 = vsel %vm923, %v922, %v918
        %v928 = vperm.slane %v633, 3
        %v929 = vperm.slane %v634, 3
        %v930 = vmul.f32 %v926, %v928
        %v931 = vmul.f32 %v924, %v929
        %v932 = vmul.f32 %v927, %v928
        %v933 = vmul.f32 %v925, %v929
        %s934 = scalar_lea.vmem %s5, 72
        %v935 = vld [vmem:[%s934] sm:$0xff]
        %v936 = vld [vmem:[%s934 + $0x8] sm:$0xff]
        %v937 = vld [vmem:[%s934 + $0x10] sm:$0xff]
        %v939 = vsel %vm684, %v935, 0
        %v942 = vsel %vm684, %v936, 0
        %v945 = vsel %vm684, %v937, 0
        %v948 = vsel %vm580, %v932, 0
        %v951 = vsel %vm580, %v933, 0
        %953 = vmatpush.msra.mxu0 0.0
        %954 = vmatpush.msra.mxu0 0.0
        %955 = vmatpush.msra.mxu0 0.0
        %956 = vmatpush.msra.mxu0 0.0
        %957 = vmatpush.msra.mxu0 0.0
        %958 = vmatpush.msra.mxu0 0.0
        %959 = vmatpush.msra.mxu0 0.0
        %960 = vmatpush.msra.mxu0 0.0
        %961 = vmatpush.msra.mxu0 0.0
        %962 = vmatpush.msra.mxu0 0.0
        %963 = vmatpush.msra.mxu0 0.0
        %964 = vmatpush.msra.mxu0 0.0
        %965 = vmatpush.msra.mxu0 0.0
        %966 = vmatpush.msra.mxu0 0.0
        %967 = vmatpush.msra.mxu0 %v948
        %968 = vmatpush.msra.mxu0 %v930
        %969 = vmatmul.f32.gmra.mxu0 %v939
        %v970 = vpop.f32.mrf.mxu0
        %v971 = vadd.f32 0.0, %v970
        %972 = vmatmul.f32.gmra.mxu0 %v942
        %v973 = vpop.f32.mrf.mxu0
        %v974 = vadd.f32 0.0, %v973
        %975 = vmatmul.f32.gmra.mxu0 %v945
        %v976 = vpop.f32.mrf.mxu0
        %v977 = vadd.f32 0.0, %v976
        %978 = vdwg.mxu0
        %979 = vmatpush.msra.mxu0 0.0
        %980 = vmatpush.msra.mxu0 0.0
        %981 = vmatpush.msra.mxu0 0.0
        %982 = vmatpush.msra.mxu0 0.0
        %983 = vmatpush.msra.mxu0 0.0
        %984 = vmatpush.msra.mxu0 0.0
        %985 = vmatpush.msra.mxu0 0.0
        %986 = vmatpush.msra.mxu0 0.0
        %987 = vmatpush.msra.mxu0 0.0
        %988 = vmatpush.msra.mxu0 0.0
        %989 = vmatpush.msra.mxu0 0.0
        %990 = vmatpush.msra.mxu0 0.0
        %991 = vmatpush.msra.mxu0 0.0
        %992 = vmatpush.msra.mxu0 0.0
        %993 = vmatpush.msra.mxu0 %v951
        %994 = vmatpush.msra.mxu0 %v931
        %995 = vmatmul.f32.gmra.mxu0 %v939
        %v996 = vpop.f32.mrf.mxu0
        %v997 = vadd.f32 0.0, %v996
        %998 = vmatmul.f32.gmra.mxu0 %v942
        %v999 = vpop.f32.mrf.mxu0
        %v1000 = vadd.f32 0.0, %v999
        %1001 = vmatmul.f32.gmra.mxu0 %v945
        %v1002 = vpop.f32.mrf.mxu0
        %v1003 = vadd.f32 0.0, %v1002
        %1004 = vdwg.mxu0
        %v1005 = vadd.f32 %v909, %v971
        %v1006 = vadd.f32 %v910, %v997
        %v1007 = vadd.f32 %v911, %v974
        %v1008 = vadd.f32 %v912, %v1000
        %v1009 = vadd.f32 %v913, %v977
        %v1010 = vadd.f32 %v914, %v1003
        %s1011 = scalar_lea.vmem %s5, 96
        %v1012 = vld [vmem:[%s1011] sm:$0xff]
        %v1013 = vld [vmem:[%s1011 + $0x8] sm:$0xff]
        %v1014 = vld [vmem:[%s1011 + $0x10] sm:$0xff]
        %v1016 = vsel %vm684, %v1012, 0
        %v1019 = vsel %vm684, %v1013, 0
        %v1022 = vsel %vm684, %v1014, 0
        %v1025 = vsel %vm580, %v608, 0
        %v1028 = vsel %vm580, %v631, 0
        %1030 = vmatpush.msra.mxu0 0.0
        %1031 = vmatpush.msra.mxu0 0.0
        %1032 = vmatpush.msra.mxu0 0.0
        %1033 = vmatpush.msra.mxu0 0.0
        %1034 = vmatpush.msra.mxu0 0.0
        %1035 = vmatpush.msra.mxu0 0.0
        %1036 = vmatpush.msra.mxu0 0.0
        %1037 = vmatpush.msra.mxu0 0.0
        %1038 = vmatpush.msra.mxu0 0.0
        %1039 = vmatpush.msra.mxu0 0.0
        %1040 = vmatpush.msra.mxu0 0.0
        %1041 = vmatpush.msra.mxu0 0.0
        %1042 = vmatpush.msra.mxu0 0.0
        %1043 = vmatpush.msra.mxu0 0.0
        %1044 = vmatpush.msra.mxu0 %v1025
        %1045 = vmatpush.msra.mxu0 %v605
        %1046 = vmatmul.f32.gmra.mxu0 %v1016
        %v1047 = vpop.f32.mrf.mxu0
        %v1048 = vadd.f32 0.0, %v1047
        %1049 = vmatmul.f32.gmra.mxu0 %v1019
        %v1050 = vpop.f32.mrf.mxu0
        %v1051 = vadd.f32 0.0, %v1050
        %1052 = vmatmul.f32.gmra.mxu0 %v1022
        %v1053 = vpop.f32.mrf.mxu0
        %v1054 = vadd.f32 0.0, %v1053
        %1055 = vdwg.mxu0
        %1056 = vmatpush.msra.mxu0 0.0
        %1057 = vmatpush.msra.mxu0 0.0
        %1058 = vmatpush.msra.mxu0 0.0
        %1059 = vmatpush.msra.mxu0 0.0
        %1060 = vmatpush.msra.mxu0 0.0
        %1061 = vmatpush.msra.mxu0 0.0
        %1062 = vmatpush.msra.mxu0 0.0
        %1063 = vmatpush.msra.mxu0 0.0
        %1064 = vmatpush.msra.mxu0 0.0
        %1065 = vmatpush.msra.mxu0 0.0
        %1066 = vmatpush.msra.mxu0 0.0
        %1067 = vmatpush.msra.mxu0 0.0
        %1068 = vmatpush.msra.mxu0 0.0
        %1069 = vmatpush.msra.mxu0 0.0
        %1070 = vmatpush.msra.mxu0 %v1028
        %1071 = vmatpush.msra.mxu0 %v628
        %1072 = vmatmul.f32.gmra.mxu0 %v1016
        %v1073 = vpop.f32.mrf.mxu0
        %v1074 = vadd.f32 0.0, %v1073
        %1075 = vmatmul.f32.gmra.mxu0 %v1019
        %v1076 = vpop.f32.mrf.mxu0
        %v1077 = vadd.f32 0.0, %v1076
        %1078 = vmatmul.f32.gmra.mxu0 %v1022
        %v1079 = vpop.f32.mrf.mxu0
        %v1080 = vadd.f32 0.0, %v1079
        %1081 = vdwg.mxu0
        %v1082 = vadd.f32 %v1005, %v1048
        %v1083 = vadd.f32 %v1006, %v1074
        %v1084 = vadd.f32 %v1007, %v1051
        %v1085 = vadd.f32 %v1008, %v1077
        %v1086 = vadd.f32 %v1009, %v1054
        %v1087 = vadd.f32 %v1010, %v1080
        %1088 = vrot.lane.b32.xlu0 %v605, 127
        %v1089 = vpop.permute.xlu0 %1088
        %1090 = vrot.lane.b32.xlu0 %v608, 127
        %v1091 = vpop.permute.xlu0 %1090
        %1092 = vrot.lane.b32.xlu0 %v628, 127
        %v1093 = vpop.permute.xlu0 %1092
        %1094 = vrot.lane.b32.xlu0 %v631, 127
        %v1095 = vpop.permute.xlu0 %1094
        %vm1096 = vcmp.lt.s32.totalorder %v646, 127
        %v1097 = vsel %vm1096, %v1089, %v1093
        %v1098 = vsel %vm1096, %v1091, %v1095
        %v1099 = vsel %vm1096, %v1093, %v1089
        %v1100 = vsel %vm1096, %v1095, %v1091
        %v1101 = vperm.slane %v633, 5
        %v1102 = vperm.slane %v634, 5
        %v1103 = vmul.f32 %v1097, %v1101
        %v1104 = vmul.f32 %v1099, %v1102
        %v1105 = vmul.f32 %v1098, %v1101
        %v1106 = vmul.f32 %v1100, %v1102
        %s1107 = scalar_lea.vmem %s5, 120
        %v1108 = vld [vmem:[%s1107] sm:$0xff]
        %v1109 = vld [vmem:[%s1107 + $0x8] sm:$0xff]
        %v1110 = vld [vmem:[%s1107 + $0x10] sm:$0xff]
        %v1112 = vsel %vm684, %v1108, 0
        %v1115 = vsel %vm684, %v1109, 0
        %v1118 = vsel %vm684, %v1110, 0
        %v1121 = vsel %vm580, %v1105, 0
        %v1124 = vsel %vm580, %v1106, 0
        %1126 = vmatpush.msra.mxu0 0.0
        %1127 = vmatpush.msra.mxu0 0.0
        %1128 = vmatpush.msra.mxu0 0.0
        %1129 = vmatpush.msra.mxu0 0.0
        %1130 = vmatpush.msra.mxu0 0.0
        %1131 = vmatpush.msra.mxu0 0.0
        %1132 = vmatpush.msra.mxu0 0.0
        %1133 = vmatpush.msra.mxu0 0.0
        %1134 = vmatpush.msra.mxu0 0.0
        %1135 = vmatpush.msra.mxu0 0.0
        %1136 = vmatpush.msra.mxu0 0.0
        %1137 = vmatpush.msra.mxu0 0.0
        %1138 = vmatpush.msra.mxu0 0.0
        %1139 = vmatpush.msra.mxu0 0.0
        %1140 = vmatpush.msra.mxu0 %v1121
        %1141 = vmatpush.msra.mxu0 %v1103
        %1142 = vmatmul.f32.gmra.mxu0 %v1112
        %v1143 = vpop.f32.mrf.mxu0
        %v1144 = vadd.f32 0.0, %v1143
        %1145 = vmatmul.f32.gmra.mxu0 %v1115
        %v1146 = vpop.f32.mrf.mxu0
        %v1147 = vadd.f32 0.0, %v1146
        %1148 = vmatmul.f32.gmra.mxu0 %v1118
        %v1149 = vpop.f32.mrf.mxu0
        %v1150 = vadd.f32 0.0, %v1149
        %1151 = vdwg.mxu0
        %1152 = vmatpush.msra.mxu0 0.0
        %1153 = vmatpush.msra.mxu0 0.0
        %1154 = vmatpush.msra.mxu0 0.0
        %1155 = vmatpush.msra.mxu0 0.0
        %1156 = vmatpush.msra.mxu0 0.0
        %1157 = vmatpush.msra.mxu0 0.0
        %1158 = vmatpush.msra.mxu0 0.0
        %1159 = vmatpush.msra.mxu0 0.0
        %1160 = vmatpush.msra.mxu0 0.0
        %1161 = vmatpush.msra.mxu0 0.0
        %1162 = vmatpush.msra.mxu0 0.0
        %1163 = vmatpush.msra.mxu0 0.0
        %1164 = vmatpush.msra.mxu0 0.0
        %1165 = vmatpush.msra.mxu0 0.0
        %1166 = vmatpush.msra.mxu0 %v1124
        %1167 = vmatpush.msra.mxu0 %v1104
        %1168 = vmatmul.f32.gmra.mxu0 %v1112
        %v1169 = vpop.f32.mrf.mxu0
        %v1170 = vadd.f32 0.0, %v1169
        %1171 = vmatmul.f32.gmra.mxu0 %v1115
        %v1172 = vpop.f32.mrf.mxu0
        %v1173 = vadd.f32 0.0, %v1172
        %1174 = vmatmul.f32.gmra.mxu0 %v1118
        %v1175 = vpop.f32.mrf.mxu0
        %v1176 = vadd.f32 0.0, %v1175
        %1177 = vdwg.mxu0
        %v1178 = vadd.f32 %v1082, %v1144
        %v1179 = vadd.f32 %v1083, %v1170
        %v1180 = vadd.f32 %v1084, %v1147
        %v1181 = vadd.f32 %v1085, %v1173
        %v1182 = vadd.f32 %v1086, %v1150
        %v1183 = vadd.f32 %v1087, %v1176
        %1184 = vrot.lane.b32.xlu0 %v605, 113
        %v1185 = vpop.permute.xlu0 %1184
        %1186 = vrot.lane.b32.xlu0 %v608, 113
        %v1187 = vpop.permute.xlu0 %1186
        %1188 = vrot.lane.b32.xlu0 %v628, 113
        %v1189 = vpop.permute.xlu0 %1188
        %1190 = vrot.lane.b32.xlu0 %v631, 113
        %v1191 = vpop.permute.xlu0 %1190
        %vm1192 = vcmp.lt.s32.totalorder %v646, 113
        %v1193 = vsel %vm1192, %v1185, %v1189
        %v1194 = vsel %vm1192, %v1187, %v1191
        %v1195 = vsel %vm1192, %v1189, %v1185
        %v1196 = vsel %vm1192, %v1191, %v1187
        %v1197 = vperm.slane %v633, 6
        %v1198 = vperm.slane %v634, 6
        %v1199 = vmul.f32 %v1193, %v1197
        %v1200 = vmul.f32 %v1195, %v1198
        %v1201 = vmul.f32 %v1194, %v1197
        %v1202 = vmul.f32 %v1196, %v1198
        %s1203 = scalar_lea.vmem %s5, 144
        %v1204 = vld [vmem:[%s1203] sm:$0xff]
        %v1205 = vld [vmem:[%s1203 + $0x8] sm:$0xff]
        %v1206 = vld [vmem:[%s1203 + $0x10] sm:$0xff]
        %v1208 = vsel %vm684, %v1204, 0
        %v1211 = vsel %vm684, %v1205, 0
        %v1214 = vsel %vm684, %v1206, 0
        %v1217 = vsel %vm580, %v1201, 0
        %v1220 = vsel %vm580, %v1202, 0
        %1222 = vmatpush.msra.mxu0 0.0
        %1223 = vmatpush.msra.mxu0 0.0
        %1224 = vmatpush.msra.mxu0 0.0
        %1225 = vmatpush.msra.mxu0 0.0
        %1226 = vmatpush.msra.mxu0 0.0
        %1227 = vmatpush.msra.mxu0 0.0
        %1228 = vmatpush.msra.mxu0 0.0
        %1229 = vmatpush.msra.mxu0 0.0
        %1230 = vmatpush.msra.mxu0 0.0
        %1231 = vmatpush.msra.mxu0 0.0
        %1232 = vmatpush.msra.mxu0 0.0
        %1233 = vmatpush.msra.mxu0 0.0
        %1234 = vmatpush.msra.mxu0 0.0
        %1235 = vmatpush.msra.mxu0 0.0
        %1236 = vmatpush.msra.mxu0 %v1217
        %1237 = vmatpush.msra.mxu0 %v1199
        %1238 = vmatmul.f32.gmra.mxu0 %v1208
        %v1239 = vpop.f32.mrf.mxu0
        %v1240 = vadd.f32 0.0, %v1239
        %1241 = vmatmul.f32.gmra.mxu0 %v1211
        %v1242 = vpop.f32.mrf.mxu0
        %v1243 = vadd.f32 0.0, %v1242
        %1244 = vmatmul.f32.gmra.mxu0 %v1214
        %v1245 = vpop.f32.mrf.mxu0
        %v1246 = vadd.f32 0.0, %v1245
        %1247 = vdwg.mxu0
        %1248 = vmatpush.msra.mxu0 0.0
        %1249 = vmatpush.msra.mxu0 0.0
        %1250 = vmatpush.msra.mxu0 0.0
        %1251 = vmatpush.msra.mxu0 0.0
        %1252 = vmatpush.msra.mxu0 0.0
        %1253 = vmatpush.msra.mxu0 0.0
        %1254 = vmatpush.msra.mxu0 0.0
        %1255 = vmatpush.msra.mxu0 0.0
        %1256 = vmatpush.msra.mxu0 0.0
        %1257 = vmatpush.msra.mxu0 0.0
        %1258 = vmatpush.msra.mxu0 0.0
        %1259 = vmatpush.msra.mxu0 0.0
        %1260 = vmatpush.msra.mxu0 0.0
        %1261 = vmatpush.msra.mxu0 0.0
        %1262 = vmatpush.msra.mxu0 %v1220
        %1263 = vmatpush.msra.mxu0 %v1200
        %1264 = vmatmul.f32.gmra.mxu0 %v1208
        %v1265 = vpop.f32.mrf.mxu0
        %v1266 = vadd.f32 0.0, %v1265
        %1267 = vmatmul.f32.gmra.mxu0 %v1211
        %v1268 = vpop.f32.mrf.mxu0
        %v1269 = vadd.f32 0.0, %v1268
        %1270 = vmatmul.f32.gmra.mxu0 %v1214
        %v1271 = vpop.f32.mrf.mxu0
        %v1272 = vadd.f32 0.0, %v1271
        %1273 = vdwg.mxu0
        %v1274 = vadd.f32 %v1178, %v1240
        %v1275 = vadd.f32 %v1179, %v1266
        %v1276 = vadd.f32 %v1180, %v1243
        %v1277 = vadd.f32 %v1181, %v1269
        %v1278 = vadd.f32 %v1182, %v1246
        %v1279 = vadd.f32 %v1183, %v1272
        %1280 = vrot.lane.b32.xlu0 %v605, 112
        %v1281 = vpop.permute.xlu0 %1280
        %1282 = vrot.lane.b32.xlu0 %v608, 112
        %v1283 = vpop.permute.xlu0 %1282
        %1284 = vrot.lane.b32.xlu0 %v628, 112
        %v1285 = vpop.permute.xlu0 %1284
        %1286 = vrot.lane.b32.xlu0 %v631, 112
        %v1287 = vpop.permute.xlu0 %1286
        %vm1288 = vcmp.lt.s32.totalorder %v646, 112
        %v1289 = vsel %vm1288, %v1281, %v1285
        %v1290 = vsel %vm1288, %v1283, %v1287
        %v1291 = vsel %vm1288, %v1285, %v1281
        %v1292 = vsel %vm1288, %v1287, %v1283
        %v1293 = vperm.slane %v633, 7
        %v1294 = vperm.slane %v634, 7
        %v1295 = vmul.f32 %v1289, %v1293
        %v1296 = vmul.f32 %v1291, %v1294
        %v1297 = vmul.f32 %v1290, %v1293
        %v1298 = vmul.f32 %v1292, %v1294
        %s1299 = scalar_lea.vmem %s5, 168
        %v1300 = vld [vmem:[%s1299] sm:$0xff]
        %v1301 = vld [vmem:[%s1299 + $0x8] sm:$0xff]
        %v1302 = vld [vmem:[%s1299 + $0x10] sm:$0xff]
        %v1304 = vsel %vm684, %v1300, 0
        %v1307 = vsel %vm684, %v1301, 0
        %v1310 = vsel %vm684, %v1302, 0
        %v1313 = vsel %vm580, %v1297, 0
        %v1316 = vsel %vm580, %v1298, 0
        %1318 = vmatpush.msra.mxu0 0.0
        %1319 = vmatpush.msra.mxu0 0.0
        %1320 = vmatpush.msra.mxu0 0.0
        %1321 = vmatpush.msra.mxu0 0.0
        %1322 = vmatpush.msra.mxu0 0.0
        %1323 = vmatpush.msra.mxu0 0.0
        %1324 = vmatpush.msra.mxu0 0.0
        %1325 = vmatpush.msra.mxu0 0.0
        %1326 = vmatpush.msra.mxu0 0.0
        %1327 = vmatpush.msra.mxu0 0.0
        %1328 = vmatpush.msra.mxu0 0.0
        %1329 = vmatpush.msra.mxu0 0.0
        %1330 = vmatpush.msra.mxu0 0.0
        %1331 = vmatpush.msra.mxu0 0.0
        %1332 = vmatpush.msra.mxu0 %v1313
        %1333 = vmatpush.msra.mxu0 %v1295
        %1334 = vmatmul.f32.gmra.mxu0 %v1304
        %v1335 = vpop.f32.mrf.mxu0
        %v1336 = vadd.f32 0.0, %v1335
        %1337 = vmatmul.f32.gmra.mxu0 %v1307
        %v1338 = vpop.f32.mrf.mxu0
        %v1339 = vadd.f32 0.0, %v1338
        %1340 = vmatmul.f32.gmra.mxu0 %v1310
        %v1341 = vpop.f32.mrf.mxu0
        %v1342 = vadd.f32 0.0, %v1341
        %1343 = vdwg.mxu0
        %1344 = vmatpush.msra.mxu0 0.0
        %1345 = vmatpush.msra.mxu0 0.0
        %1346 = vmatpush.msra.mxu0 0.0
        %1347 = vmatpush.msra.mxu0 0.0
        %1348 = vmatpush.msra.mxu0 0.0
        %1349 = vmatpush.msra.mxu0 0.0
        %1350 = vmatpush.msra.mxu0 0.0
        %1351 = vmatpush.msra.mxu0 0.0
        %1352 = vmatpush.msra.mxu0 0.0
        %1353 = vmatpush.msra.mxu0 0.0
        %1354 = vmatpush.msra.mxu0 0.0
        %1355 = vmatpush.msra.mxu0 0.0
        %1356 = vmatpush.msra.mxu0 0.0
        %1357 = vmatpush.msra.mxu0 0.0
        %1358 = vmatpush.msra.mxu0 %v1316
        %1359 = vmatpush.msra.mxu0 %v1296
        %1360 = vmatmul.f32.gmra.mxu0 %v1304
        %v1361 = vpop.f32.mrf.mxu0
        %v1362 = vadd.f32 0.0, %v1361
        %1363 = vmatmul.f32.gmra.mxu0 %v1307
        %v1364 = vpop.f32.mrf.mxu0
        %v1365 = vadd.f32 0.0, %v1364
        %1366 = vmatmul.f32.gmra.mxu0 %v1310
        %v1367 = vpop.f32.mrf.mxu0
        %v1368 = vadd.f32 0.0, %v1367
        %1369 = vdwg.mxu0
        %v1370 = vadd.f32 %v1274, %v1336
        %v1371 = vadd.f32 %v1275, %v1362
        %v1372 = vadd.f32 %v1276, %v1339
        %v1373 = vadd.f32 %v1277, %v1365
        %v1374 = vadd.f32 %v1278, %v1342
        %v1375 = vadd.f32 %v1279, %v1368
        %1376 = vrot.lane.b32.xlu0 %v605, 111
        %v1377 = vpop.permute.xlu0 %1376
        %1378 = vrot.lane.b32.xlu0 %v608, 111
        %v1379 = vpop.permute.xlu0 %1378
        %1380 = vrot.lane.b32.xlu0 %v628, 111
        %v1381 = vpop.permute.xlu0 %1380
        %1382 = vrot.lane.b32.xlu0 %v631, 111
        %v1383 = vpop.permute.xlu0 %1382
        %vm1384 = vcmp.lt.s32.totalorder %v646, 111
        %v1385 = vsel %vm1384, %v1377, %v1381
        %v1386 = vsel %vm1384, %v1379, %v1383
        %v1387 = vsel %vm1384, %v1381, %v1377
        %v1388 = vsel %vm1384, %v1383, %v1379
        %v1389 = vperm.slane %v635, 0
        %v1390 = vperm.slane %v636, 0
        %v1391 = vmul.f32 %v1385, %v1389
        %v1392 = vmul.f32 %v1387, %v1390
        %v1393 = vmul.f32 %v1386, %v1389
        %v1394 = vmul.f32 %v1388, %v1390
        %s1395 = scalar_lea.vmem %s5, 192
        %v1396 = vld [vmem:[%s1395] sm:$0xff]
        %v1397 = vld [vmem:[%s1395 + $0x8] sm:$0xff]
        %v1398 = vld [vmem:[%s1395 + $0x10] sm:$0xff]
        %v1400 = vsel %vm684, %v1396, 0
        %v1403 = vsel %vm684, %v1397, 0
        %v1406 = vsel %vm684, %v1398, 0
        %v1409 = vsel %vm580, %v1393, 0
        %v1412 = vsel %vm580, %v1394, 0
        %1414 = vmatpush.msra.mxu0 0.0
        %1415 = vmatpush.msra.mxu0 0.0
        %1416 = vmatpush.msra.mxu0 0.0
        %1417 = vmatpush.msra.mxu0 0.0
        %1418 = vmatpush.msra.mxu0 0.0
        %1419 = vmatpush.msra.mxu0 0.0
        %1420 = vmatpush.msra.mxu0 0.0
        %1421 = vmatpush.msra.mxu0 0.0
        %1422 = vmatpush.msra.mxu0 0.0
        %1423 = vmatpush.msra.mxu0 0.0
        %1424 = vmatpush.msra.mxu0 0.0
        %1425 = vmatpush.msra.mxu0 0.0
        %1426 = vmatpush.msra.mxu0 0.0
        %1427 = vmatpush.msra.mxu0 0.0
        %1428 = vmatpush.msra.mxu0 %v1409
        %1429 = vmatpush.msra.mxu0 %v1391
        %1430 = vmatmul.f32.gmra.mxu0 %v1400
        %v1431 = vpop.f32.mrf.mxu0
        %v1432 = vadd.f32 0.0, %v1431
        %1433 = vmatmul.f32.gmra.mxu0 %v1403
        %v1434 = vpop.f32.mrf.mxu0
        %v1435 = vadd.f32 0.0, %v1434
        %1436 = vmatmul.f32.gmra.mxu0 %v1406
        %v1437 = vpop.f32.mrf.mxu0
        %v1438 = vadd.f32 0.0, %v1437
        %1439 = vdwg.mxu0
        %1440 = vmatpush.msra.mxu0 0.0
        %1441 = vmatpush.msra.mxu0 0.0
        %1442 = vmatpush.msra.mxu0 0.0
        %1443 = vmatpush.msra.mxu0 0.0
        %1444 = vmatpush.msra.mxu0 0.0
        %1445 = vmatpush.msra.mxu0 0.0
        %1446 = vmatpush.msra.mxu0 0.0
        %1447 = vmatpush.msra.mxu0 0.0
        %1448 = vmatpush.msra.mxu0 0.0
        %1449 = vmatpush.msra.mxu0 0.0
        %1450 = vmatpush.msra.mxu0 0.0
        %1451 = vmatpush.msra.mxu0 0.0
        %1452 = vmatpush.msra.mxu0 0.0
        %1453 = vmatpush.msra.mxu0 0.0
        %1454 = vmatpush.msra.mxu0 %v1412
        %1455 = vmatpush.msra.mxu0 %v1392
        %1456 = vmatmul.f32.gmra.mxu0 %v1400
        %v1457 = vpop.f32.mrf.mxu0
        %v1458 = vadd.f32 0.0, %v1457
        %1459 = vmatmul.f32.gmra.mxu0 %v1403
        %v1460 = vpop.f32.mrf.mxu0
        %v1461 = vadd.f32 0.0, %v1460
        %1462 = vmatmul.f32.gmra.mxu0 %v1406
        %v1463 = vpop.f32.mrf.mxu0
        %v1464 = vadd.f32 0.0, %v1463
        %1465 = vdwg.mxu0
        %v1466 = vadd.f32 %v1370, %v1432
        %v1467 = vadd.f32 %v1371, %v1458
        %v1468 = vadd.f32 %v1372, %v1435
        %v1469 = vadd.f32 %v1373, %v1461
        %v1470 = vadd.f32 %v1374, %v1438
        %v1471 = vadd.f32 %v1375, %v1464
        %v1472 = vld [vmem:[%s6] sm:$0xff]
        %v1473 = vld [vmem:[%s6 + $0x8] sm:$0xff]
        %v1474 = vld [vmem:[%s6 + $0x10] sm:$0xff]
        %1476 = vset.pattern.permute.xlu0 0
        %1477 = vperm.xlu0 %1476, %v1472
        %v1478 = vpop.permute.xlu0 %1477
        %1481 = vset.pattern.permute.xlu0 0
        %1482 = vperm.xlu0 %1481, %v1473
        %v1483 = vpop.permute.xlu0 %1482
        %1486 = vset.pattern.permute.xlu0 0
        %1487 = vperm.xlu0 %1486, %v1474
        %v1488 = vpop.permute.xlu0 %1487
        %v1490 = vadd.f32 %v1466, %v1478
        %v1491 = vadd.f32 %v1467, %v1478
        %v1492 = vadd.f32 %v1468, %v1483
        %v1493 = vadd.f32 %v1469, %v1483
        %v1494 = vadd.f32 %v1470, %v1488
        %v1495 = vadd.f32 %v1471, %v1488
        %v1496 = vadd.f32 %v1490, %v1491
        %1497 = vadd.xlane.f32.xlu0 %v1496
        %v1498 = vpop.xlane.xlu0 %1497
        %v1499 = vadd.f32 %v1492, %v1493
        %1500 = vadd.xlane.f32.xlu0 %v1499
        %v1501 = vpop.xlane.xlu0 %1500
        %v1502 = vadd.f32 %v1494, %v1495
        %1503 = vadd.xlane.f32.xlu0 %v1502
        %v1504 = vpop.xlane.xlu0 %1503
        %v1505 = vmul.f32 %v1498, 0.00390625
        %v1506 = vmul.f32 %v1501, 0.00390625
        %v1507 = vmul.f32 %v1504, 0.00390625
        %v1508 = vsub.f32 %v1490, %v1505
        %v1509 = vsub.f32 %v1491, %v1505
        %v1510 = vsub.f32 %v1492, %v1506
        %v1511 = vsub.f32 %v1493, %v1506
        %v1512 = vsub.f32 %v1494, %v1507
        %v1513 = vsub.f32 %v1495, %v1507
        %v1514 = vmul.f32 %v1508, %v1508
        %v1515 = vmul.f32 %v1509, %v1509
        %v1516 = vmul.f32 %v1510, %v1510
        %v1517 = vmul.f32 %v1511, %v1511
        %v1518 = vmul.f32 %v1512, %v1512
        %v1519 = vmul.f32 %v1513, %v1513
        %v1520 = vadd.f32 %v1514, %v1515
        %1521 = vadd.xlane.f32.xlu0 %v1520
        %v1522 = vpop.xlane.xlu0 %1521
        %v1523 = vadd.f32 %v1516, %v1517
        %1524 = vadd.xlane.f32.xlu0 %v1523
        %v1525 = vpop.xlane.xlu0 %1524
        %v1526 = vadd.f32 %v1518, %v1519
        %1527 = vadd.xlane.f32.xlu0 %v1526
        %v1528 = vpop.xlane.xlu0 %1527
        %v1529 = vmul.f32 %v1522, 0.00390625
        %v1530 = vmul.f32 %v1525, 0.00390625
        %v1531 = vmul.f32 %v1528, 0.00390625
        %v1532 = vld [vmem:[%s7] sm:$0xff]
        %v1533 = vld [vmem:[%s7 + $0x8] sm:$0xff]
        %v1534 = vld [vmem:[%s7 + $0x10] sm:$0xff]
        %v1535 = vmul.f32 %v1532, %v1505
        %v1536 = vmul.f32 %v1533, %v1506
        %v1537 = vmul.f32 %v1534, %v1507
        %1541 = vrot.lane.b32.xlu0 %v1532, 127
        %v1542 = vpop.permute.xlu0 %1541
        %1543 = vrot.lane.b32.xlu0 %v1533, 127
        %v1544 = vpop.permute.xlu0 %1543
        %1545 = vrot.lane.b32.xlu0 %v1534, 127
        %v1546 = vpop.permute.xlu0 %1545
        %v1550 = vadd.f32 %v1535, %v1542
        %v1551 = vadd.f32 %v1536, %v1544
        %v1552 = vadd.f32 %v1537, %v1546
        %v1553 = vadd.f32 %v1529, 1e-05
        %v1554 = vadd.f32 %v1530, 1e-05
        %v1555 = vadd.f32 %v1531, 1e-05
        %v1556 = vrsqrt.pop %v1553
        %v1557 = vmul.f32 %v1556, %v1553
        %v1558 = vmul.f32 %v1557, %v1556
        %v1559 = vmul.f32 0.5, %v1558
        %v1560 = vsub.f32 1.5, %v1559
        %v1561 = vmul.f32 %v1556, %v1560
        %vm1562 = vweird.f32 %v1553
        %vm1563 = vweird.f32 %v1556
        %vm1564 = vmor %vm1562, %vm1563
        %v1565 = vsel %vm1564, %v1556, %v1561
        %v1566 = vrsqrt.pop %v1554
        %v1567 = vmul.f32 %v1566, %v1554
        %v1568 = vmul.f32 %v1567, %v1566
        %v1569 = vmul.f32 0.5, %v1568
        %v1570 = vsub.f32 1.5, %v1569
        %v1571 = vmul.f32 %v1566, %v1570
        %vm1572 = vweird.f32 %v1554
        %vm1573 = vweird.f32 %v1566
        %vm1574 = vmor %vm1572, %vm1573
        %v1575 = vsel %vm1574, %v1566, %v1571
        %v1576 = vrsqrt.pop %v1555
        %v1577 = vmul.f32 %v1576, %v1555
        %v1578 = vmul.f32 %v1577, %v1576
        %v1579 = vmul.f32 0.5, %v1578
        %v1580 = vsub.f32 1.5, %v1579
        %v1581 = vmul.f32 %v1576, %v1580
        %vm1582 = vweird.f32 %v1555
        %vm1583 = vweird.f32 %v1576
        %vm1584 = vmor %vm1582, %vm1583
        %v1585 = vsel %vm1584, %v1576, %v1581
        %v1586 = vmul.f32 %v1508, %v1565
        %v1587 = vmul.f32 %v1509, %v1565
        %v1588 = vmul.f32 %v1510, %v1575
        %v1589 = vmul.f32 %v1511, %v1575
        %v1590 = vmul.f32 %v1512, %v1585
        %v1591 = vmul.f32 %v1513, %v1585
        %1592 = vset.pattern.permute.xlu0 2
        %1593 = vperm.xlu0 %1592, %v1532
        %v1594 = vpop.permute.xlu0 %1593
        %1596 = vset.pattern.permute.xlu0 2
        %1597 = vperm.xlu0 %1596, %v1533
        %v1598 = vpop.permute.xlu0 %1597
        %1600 = vset.pattern.permute.xlu0 2
        %1601 = vperm.xlu0 %1600, %v1534
        %v1602 = vpop.permute.xlu0 %1601
        %v1604 = vmul.f32 %v1586, %v1594
        %v1605 = vmul.f32 %v1587, %v1594
        %v1606 = vmul.f32 %v1588, %v1598
        %v1607 = vmul.f32 %v1589, %v1598
        %v1608 = vmul.f32 %v1590, %v1602
        %v1609 = vmul.f32 %v1591, %v1602
        %1610 = vset.pattern.permute.xlu0 3
        %1611 = vperm.xlu0 %1610, %v1532
        %v1612 = vpop.permute.xlu0 %1611
        %1614 = vset.pattern.permute.xlu0 3
        %1615 = vperm.xlu0 %1614, %v1533
        %v1616 = vpop.permute.xlu0 %1615
        %1618 = vset.pattern.permute.xlu0 3
        %1619 = vperm.xlu0 %1618, %v1534
        %v1620 = vpop.permute.xlu0 %1619
        %v1622 = vadd.f32 %v1604, %v1612
        %v1623 = vadd.f32 %v1605, %v1612
        %v1624 = vadd.f32 %v1606, %v1616
        %v1625 = vadd.f32 %v1607, %v1616
        %v1626 = vadd.f32 %v1608, %v1620
        %v1627 = vadd.f32 %v1609, %v1620
        %1628 = vset.pattern.permute.xlu0 4
        %1629 = vperm.xlu0 %1628, %v1532
        %v1630 = vpop.permute.xlu0 %1629
        %1632 = vset.pattern.permute.xlu0 4
        %1633 = vperm.xlu0 %1632, %v1533
        %v1634 = vpop.permute.xlu0 %1633
        %1636 = vset.pattern.permute.xlu0 4
        %1637 = vperm.xlu0 %1636, %v1534
        %v1638 = vpop.permute.xlu0 %1637
        %v1640 = vmul.f32 %v1630, %v1622
        %v1641 = vmul.f32 %v1630, %v1623
        %v1642 = vmul.f32 %v1634, %v1624
        %v1643 = vmul.f32 %v1634, %v1625
        %v1644 = vmul.f32 %v1638, %v1626
        %v1645 = vmul.f32 %v1638, %v1627
        %1646 = vset.pattern.permute.xlu0 5
        %1647 = vperm.xlu0 %1646, %v1532
        %v1648 = vpop.permute.xlu0 %1647
        %1650 = vset.pattern.permute.xlu0 5
        %1651 = vperm.xlu0 %1650, %v1533
        %v1652 = vpop.permute.xlu0 %1651
        %1654 = vset.pattern.permute.xlu0 5
        %1655 = vperm.xlu0 %1654, %v1534
        %v1656 = vpop.permute.xlu0 %1655
        %v1658 = vadd.f32 %v1640, %v1648
        %v1659 = vadd.f32 %v1641, %v1648
        %v1660 = vadd.f32 %v1642, %v1652
        %v1661 = vadd.f32 %v1643, %v1652
        %v1662 = vadd.f32 %v1644, %v1656
        %v1663 = vadd.f32 %v1645, %v1656
        %1664 = vset.pattern.permute.xlu0 6
        %1665 = vperm.xlu0 %1664, %v1532
        %v1666 = vpop.permute.xlu0 %1665
        %1668 = vset.pattern.permute.xlu0 6
        %1669 = vperm.xlu0 %1668, %v1533
        %v1670 = vpop.permute.xlu0 %1669
        %1672 = vset.pattern.permute.xlu0 6
        %1673 = vperm.xlu0 %1672, %v1534
        %v1674 = vpop.permute.xlu0 %1673
        %vm1676 = vcmp.gt.f32.partialorder %v1666, 0.5
        %vm1677 = vcmp.gt.f32.partialorder %v1670, 0.5
        %vm1678 = vcmp.gt.f32.partialorder %v1674, 0.5
        %1680 = vset.pattern.permute.xlu0 0
        %1681 = vperm.xlu0 %1680, %v1550
        %v1682 = vpop.permute.xlu0 %1681
        %1685 = vset.pattern.permute.xlu0 0
        %1686 = vperm.xlu0 %1685, %v1551
        %v1687 = vpop.permute.xlu0 %1686
        %1690 = vset.pattern.permute.xlu0 0
        %1691 = vperm.xlu0 %1690, %v1552
        %v1692 = vpop.permute.xlu0 %1691
        %v1694 = vsel %vm1676, %v1658, %v1682
        %v1695 = vsel %vm1676, %v1659, %v1682
        %v1696 = vsel %vm1677, %v1660, %v1687
        %v1697 = vsel %vm1677, %v1661, %v1687
        %v1698 = vsel %vm1678, %v1662, %v1692
        %v1699 = vsel %vm1678, %v1663, %v1692
        %v1700 = vsub.f32 0.0, %v1694
        %v1701 = vsub.f32 0.0, %v1695
        %v1702 = vsub.f32 0.0, %v1696
        %v1703 = vsub.f32 0.0, %v1697
        %v1704 = vsub.f32 0.0, %v1698
        %v1705 = vsub.f32 0.0, %v1699
        %v1706 = vmul.f32 %v1700, 1.442695
        %v1707 = vpow.pop %v1706
        %v1708 = vmul.f32 %v1701, 1.442695
        %v1709 = vpow.pop %v1708
        %v1710 = vmul.f32 %v1702, 1.442695
        %v1711 = vpow.pop %v1710
        %v1712 = vmul.f32 %v1703, 1.442695
        %v1713 = vpow.pop %v1712
        %v1714 = vmul.f32 %v1704, 1.442695
        %v1715 = vpow.pop %v1714
        %v1716 = vmul.f32 %v1705, 1.442695
        %v1717 = vpow.pop %v1716
        %v1718 = vadd.f32 %v1707, 1.0
        %v1719 = vadd.f32 %v1709, 1.0
        %v1720 = vadd.f32 %v1711, 1.0
        %v1721 = vadd.f32 %v1713, 1.0
        %v1722 = vadd.f32 %v1715, 1.0
        %v1723 = vadd.f32 %v1717, 1.0
        %v1724 = vrcp.pop %v1718
        %v1725 = vmul.f32 %v1718, %v1724
        %v1726 = vsub.f32 1.0, %v1725
        %v1727 = vmul.f32 %v1724, %v1726
        %v1728 = vadd.f32 %v1724, %v1727
        %vm1729 = vweird.f32 %v1718
        %vm1730 = vweird.f32 %v1724
        %vm1731 = vmor %vm1729, %vm1730
        %v1732 = vsel %vm1731, %v1724, %v1728
        %v1733 = vand.u32 2147483647, %v1718
        %vm1734 = vcmp.eq.f32.partialorder %v1733, 8.507059e+37
        %v1735 = vand.u32 %v1718, 2147483648
        %v1736 = vor.u32 1.1754944e-38, %v1735
        %v1737 = vsel %vm1734, %v1736, %v1732
        %v1738 = vrcp.pop %v1719
        %v1739 = vmul.f32 %v1719, %v1738
        %v1740 = vsub.f32 1.0, %v1739
        %v1741 = vmul.f32 %v1738, %v1740
        %v1742 = vadd.f32 %v1738, %v1741
        %vm1743 = vweird.f32 %v1719
        %vm1744 = vweird.f32 %v1738
        %vm1745 = vmor %vm1743, %vm1744
        %v1746 = vsel %vm1745, %v1738, %v1742
        %v1747 = vand.u32 2147483647, %v1719
        %vm1748 = vcmp.eq.f32.partialorder %v1747, 8.507059e+37
        %v1749 = vand.u32 %v1719, 2147483648
        %v1750 = vor.u32 1.1754944e-38, %v1749
        %v1751 = vsel %vm1748, %v1750, %v1746
        %v1752 = vrcp.pop %v1720
        %v1753 = vmul.f32 %v1720, %v1752
        %v1754 = vsub.f32 1.0, %v1753
        %v1755 = vmul.f32 %v1752, %v1754
        %v1756 = vadd.f32 %v1752, %v1755
        %vm1757 = vweird.f32 %v1720
        %vm1758 = vweird.f32 %v1752
        %vm1759 = vmor %vm1757, %vm1758
        %v1760 = vsel %vm1759, %v1752, %v1756
        %v1761 = vand.u32 2147483647, %v1720
        %vm1762 = vcmp.eq.f32.partialorder %v1761, 8.507059e+37
        %v1763 = vand.u32 %v1720, 2147483648
        %v1764 = vor.u32 1.1754944e-38, %v1763
        %v1765 = vsel %vm1762, %v1764, %v1760
        %v1766 = vrcp.pop %v1721
        %v1767 = vmul.f32 %v1721, %v1766
        %v1768 = vsub.f32 1.0, %v1767
        %v1769 = vmul.f32 %v1766, %v1768
        %v1770 = vadd.f32 %v1766, %v1769
        %vm1771 = vweird.f32 %v1721
        %vm1772 = vweird.f32 %v1766
        %vm1773 = vmor %vm1771, %vm1772
        %v1774 = vsel %vm1773, %v1766, %v1770
        %v1775 = vand.u32 2147483647, %v1721
        %vm1776 = vcmp.eq.f32.partialorder %v1775, 8.507059e+37
        %v1777 = vand.u32 %v1721, 2147483648
        %v1778 = vor.u32 1.1754944e-38, %v1777
        %v1779 = vsel %vm1776, %v1778, %v1774
        %v1780 = vrcp.pop %v1722
        %v1781 = vmul.f32 %v1722, %v1780
        %v1782 = vsub.f32 1.0, %v1781
        %v1783 = vmul.f32 %v1780, %v1782
        %v1784 = vadd.f32 %v1780, %v1783
        %vm1785 = vweird.f32 %v1722
        %vm1786 = vweird.f32 %v1780
        %vm1787 = vmor %vm1785, %vm1786
        %v1788 = vsel %vm1787, %v1780, %v1784
        %v1789 = vand.u32 2147483647, %v1722
        %vm1790 = vcmp.eq.f32.partialorder %v1789, 8.507059e+37
        %v1791 = vand.u32 %v1722, 2147483648
        %v1792 = vor.u32 1.1754944e-38, %v1791
        %v1793 = vsel %vm1790, %v1792, %v1788
        %v1794 = vrcp.pop %v1723
        %v1795 = vmul.f32 %v1723, %v1794
        %v1796 = vsub.f32 1.0, %v1795
        %v1797 = vmul.f32 %v1794, %v1796
        %v1798 = vadd.f32 %v1794, %v1797
        %vm1799 = vweird.f32 %v1723
        %vm1800 = vweird.f32 %v1794
        %vm1801 = vmor %vm1799, %vm1800
        %v1802 = vsel %vm1801, %v1794, %v1798
        %v1803 = vand.u32 2147483647, %v1723
        %vm1804 = vcmp.eq.f32.partialorder %v1803, 8.507059e+37
        %v1805 = vand.u32 %v1723, 2147483648
        %v1806 = vor.u32 1.1754944e-38, %v1805
        %v1807 = vsel %vm1804, %v1806, %v1802
        %v1808 = vmul.f32 %v1490, %v1737
        %v1809 = vmul.f32 %v1491, %v1751
        %v1810 = vmul.f32 %v1492, %v1765
        %v1811 = vmul.f32 %v1493, %v1779
        %v1812 = vmul.f32 %v1494, %v1793
        %v1813 = vmul.f32 %v1495, %v1807
        %s1814 = sld [smem:[#allocation2]]
        %s1815 = sld [smem:[#allocation2 + $0x1]]
        %v1816 = vstv %s1814
        %v1817 = vmul.f32 %v1808, %v1816
        %v1818 = vmul.f32 %v1809, %v1816
        %v1819 = vmul.f32 %v1810, %v1816
        %v1820 = vmul.f32 %v1811, %v1816
        %v1821 = vmul.f32 %v1812, %v1816
        %v1822 = vmul.f32 %v1813, %v1816
        %v1823 = vstv %s1815
        %v1824 = vmul.f32 %v374, %v1823
        %v1825 = vmul.f32 %v375, %v1823
        %v1826 = vmul.f32 %v376, %v1823
        %v1827 = vmul.f32 %v377, %v1823
        %v1828 = vmul.f32 %v378, %v1823
        %v1829 = vmul.f32 %v379, %v1823
        %v1830 = vadd.f32 %v1817, %v1824
        %v1831 = vadd.f32 %v1818, %v1825
        %v1832 = vadd.f32 %v1819, %v1826
        %v1833 = vadd.f32 %v1820, %v1827
        %v1834 = vadd.f32 %v1821, %v1828
        %v1835 = vadd.f32 %v1822, %v1829
        %1836 = vst [vmem:[%s373] sm:$0xff] %v1830
        %1837 = vst [vmem:[%s373 + $0x8] sm:$0xff] %v1831
        %1838 = vst [vmem:[%s373 + $0x10] sm:$0xff] %v1832
        %1839 = vst [vmem:[%s373 + $0x18] sm:$0xff] %v1833
        %1840 = vst [vmem:[%s373 + $0x20] sm:$0xff] %v1834
        %1841 = vst [vmem:[%s373 + $0x28] sm:$0xff] %v1835
        %p1842 = scmp.lt.s32.totalorder %s22, 1
        %s1843 = scalar_select %p1842, %s22, 1
        %s1844 = smul.addr %s1843, 6
        %s1845 = smul.addr %s1844, 8
        %s1846 = scalar_lea.vmem %s10, %s1845
        // Predicated region
        $region65: #{srbw1_forward.1} parent=59 // pred_check
          %p1847 = pneg %p255
        $region66: #{srbw1_forward.1} parent=59 // pred_check_branch
          %1849 = sbr.rel (%p1847) target = $region68
        $region67: #{srbw1_forward.1} parent=59 // pred_region
          _
        $region68: #{srbw1_forward.1} parent=59 // pred_fallthru
          _
      $region60: #{srbw1_forward.1} parent=5 // pred_fallthru
        _
      %p1850 = scmp.le.s32.totalorder 2, %s17
      // Predicated region
      $region69: #{srbw1_forward.1} parent=5 // pred_check
        %p1851 = pneg %p1850
      $region70: #{srbw1_forward.1} parent=5 // pred_check_branch
        %1853 = sbr.rel (%p1851) target = $region72
      $region71: #{srbw1_forward.1} parent=5 // pred_region
        %s1854 = ssub.s32 %s17, 2
        // Predicated region
        $region73: #{srbw1_forward.1} parent=71 // pred_check
          %p1855 = pneg %p261
        $region74: #{srbw1_forward.1} parent=71 // pred_check_branch
          %1857 = sbr.rel (%p1855) target = $region76
        $region75: #{srbw1_forward.1} parent=71 // pred_region
          %p1858 = scmp.lt.s32.totalorder %s23, 1
          %s1859 = scalar_select %p1858, %s23, 1
          %s1860 = smul.addr %s1859, 6
          %s1861 = smul.addr %s1860, 8
          %s1862 = scalar_lea.vmem %s10, %s1861
        $region76: #{srbw1_forward.1} parent=71 // pred_fallthru
          _
      $region72: #{srbw1_forward.1} parent=5 // pred_fallthru
        _
    $region6: #{srbw1_forward.1} parent=1 // loop_footer
      %s21 = sadd.s32 1, %s17
    $region7: #{srbw1_forward.1} parent=1 // loop_footer_branch
      %16 = sbr.rel target = $region3
    $region8: #{srbw1_forward.1} parent=1 // loop_exit
      _
    %1863 = vsyncpa [#allocation3], 1
    %s1864 = scalar_lea.sflag [#allocation3], 1
    %1865 = vsyncpa %s1864, 1

</llo_original>
